<compile_context>
chip_gen: v6e
topology: v6e:2x2x1
jax: 0.10.0
libtpu: 0.0.40
codegen_flags: <defaults>
</compile_context>

<pallas_src>
import jax
import jax.numpy as jnp
from jax.experimental import pallas as pl
from jax.experimental.pallas import tpu as pltpu

# ---- module hyper-parameters (consistent with the module, in_size=28) ----
IN_SIZE = 28          # -> scaler = 4, out_channels = 1
D = 8
LATENT = 8
N_DIM_CODING = 8
P_CODING = 7
SCALER = 4
OUT_CH = 1
N_FEAT = IN_SIZE * IN_SIZE * OUT_CH          # 784
NEG_SLOPE = 0.01                             # F.leaky_relu default


def _leaky(x):
    return jnp.where(x >= 0, x, x * NEG_SLOPE)


def _round_up(n, m):
    return ((n + m - 1) // m) * m


# Bias-pack row layout (each row padded to N_FEAT lanes, f32):
#   0: encoder fc_1 bias   (128)
#   1: encoder fc_2 bias   (32)
#   2: encoder fc_3 bias   (16)
#   3: [means | log_var] fused bias (16)
#   4: translator fc4 bias (64)
#   5: decoder fc1 bias    (128)
#   6: decoder fc_2 bias   (256)
#   7: decoder fc_out bias (784)
def _vae_kernel(
    # batch-tiled inputs
    x_ref, eps_ref,
    # VMEM-resident bf16 weights (stored as (in, out))
    e1w, e2w, e3w, mlw, t3wz, t4w, d1w, d2w, dow,
    # packed f32 biases + per-call effective translator-fc1 bias
    bpack, t3beff,
    # outputs
    recon_ref, stats_ref,
):
    f32 = jnp.float32
    bf16 = jnp.bfloat16

    def bias(row, width):
        return bpack[row:row + 1, 0:width]            # (1, width) f32

    x = x_ref[...].astype(bf16)

    # --- Encoder (only_fc path): 3x (Linear + leaky_relu), fused means/log_var
    h = _leaky(jnp.dot(x, e1w[...], preferred_element_type=f32) + bias(0, 128))
    h = _leaky(jnp.dot(h.astype(bf16), e2w[...], preferred_element_type=f32) + bias(1, 32))
    h = _leaky(jnp.dot(h.astype(bf16), e3w[...], preferred_element_type=f32) + bias(2, 16))
    ml = jnp.dot(h.astype(bf16), mlw[...], preferred_element_type=f32) + bias(3, 2 * LATENT)
    means = ml[:, 0:LATENT]
    log_var = ml[:, LATENT:2 * LATENT]

    # --- Reparameterization: z = eps * exp(0.5 * log_var) + means   (f32)
    z = eps_ref[...] * jnp.exp(0.5 * log_var) + means

    # --- Translator (translate_noise=True). The task-only part
    #     (bits -> fc_enc_1 -> fc_enc_2 -> @Wt + b) is batch-invariant and was
    #     folded into t3beff in the wrapper; cat([z, task]) @ W == z@Wz + const.
    t = _leaky(jnp.dot(z.astype(bf16), t3wz[...], preferred_element_type=f32) + t3beff[...])
    tr = jnp.dot(t.astype(bf16), t4w[...], preferred_element_type=f32) + bias(4, LATENT * D)

    # --- Decoder (fc path): leaky(fc1) -> leaky(fc_2) -> fc_out -> sigmoid
    h = _leaky(jnp.dot(tr.astype(bf16), d1w[...], preferred_element_type=f32) + bias(5, 128))
    h = _leaky(jnp.dot(h.astype(bf16), d2w[...], preferred_element_type=f32) + bias(6, 256))
    out = jnp.dot(h.astype(bf16), dow[...], preferred_element_type=f32) + bias(7, N_FEAT)
    out = pl.reciprocal(1.0 + jnp.exp(-out), approx=True)     # sigmoid (in_size != 44)

    recon_ref[...] = out
    stats_ref[...] = jnp.concatenate([means, log_var, z], axis=1)   # one packed store


def init_vae_params(key):
    """Deterministic synthetic params; Linear init U(-1/sqrt(fan_in), ...).

    Weights are generated directly as (in, out). Real PyTorch state_dict
    weights would have to be transposed from (out, in) before use.
    """
    def lin(k, fin, fout):
        kw, kb = jax.random.split(k)
        bound = 1.0 / (float(fin) ** 0.5)
        w = jax.random.uniform(kw, (fin, fout), jnp.float32, -bound, bound)
        b = jax.random.uniform(kb, (1, fout), jnp.float32, -bound, bound)
        return w, b

    keys = jax.random.split(key, 12)
    p = {}
    # Encoder (only_fc): 784 -> 128 -> 32 -> 16 -> (means, log_var) of size 8
    p['e1w'], p['e1b'] = lin(keys[0], N_FEAT, D * SCALER * SCALER)
    p['e2w'], p['e2b'] = lin(keys[1], D * SCALER * SCALER, D * SCALER)
    p['e3w'], p['e3b'] = lin(keys[2], D * SCALER, D * SCALER // 2)
    p['mw'], p['mb'] = lin(keys[3], D * SCALER // 2, LATENT)
    p['lw'], p['lb'] = lin(keys[4], D * SCALER // 2, LATENT)
    # Translator: 8 -> 24 -> 16 ; cat(8 + 16) -> 32 -> 64
    p['t1w'], p['t1b'] = lin(keys[5], N_DIM_CODING, N_DIM_CODING * 3)
    p['t2w'], p['t2b'] = lin(keys[6], N_DIM_CODING * 3, N_DIM_CODING * 2)
    t3w, p['t3b'] = lin(keys[7], LATENT + N_DIM_CODING * 2, LATENT * D // 2)
    p['t3wz'], p['t3wt'] = t3w[:LATENT], t3w[LATENT:]     # cat order is [z, task_ids]
    p['t4w'], p['t4b'] = lin(keys[8], LATENT * D // 2, LATENT * D)
    # Decoder (fc): 64 -> 128 -> 256 -> 784
    p['d1w'], p['d1b'] = lin(keys[9], LATENT * D, D * SCALER * SCALER)
    p['d2w'], p['d2b'] = lin(keys[10], D * SCALER * SCALER, D * SCALER * SCALER * 2)
    p['dow'], p['dob'] = lin(keys[11], D * SCALER * SCALER * 2, N_FEAT)
    return p


def prepare_params(raw):
    """Fuse/repack raw f32 params for the kernel (bf16 weights, packed biases)."""
    mlw = jnp.concatenate([raw['mw'], raw['lw']], axis=1)    # (16, 16)
    mlb = jnp.concatenate([raw['mb'], raw['lb']], axis=1)    # (1, 16)
    weights = tuple(w.astype(jnp.bfloat16) for w in (
        raw['e1w'], raw['e2w'], raw['e3w'], mlw, raw['t3wz'],
        raw['t4w'], raw['d1w'], raw['d2w'], raw['dow']))

    biases = (raw['e1b'], raw['e2b'], raw['e3b'], mlb,
              raw['t4b'], raw['d1b'], raw['d2b'], raw['dob'])

    def pad_row(b):
        b = b.reshape(1, -1)
        return jnp.pad(b, ((0, 0), (0, N_FEAT - b.shape[1])))

    bpack = jnp.concatenate([pad_row(b) for b in biases], axis=0).astype(jnp.float32)

    task = (raw['t1w'], raw['t1b'], raw['t2w'], raw['t2b'], raw['t3wt'], raw['t3b'])
    return {'weights': weights, 'bpack': bpack, 'task': task}


def _task_bias(task_params, task_id):
    """Batch-invariant translator prefix folded into an effective fc1 bias."""
    t1w, t1b, t2w, t2b, t3wt, t3b = task_params
    codes = (jnp.asarray(task_id, jnp.int32) * P_CODING) % (2 ** N_DIM_CODING)
    # BitUnpacker.unpackbits: LSB-first bits as float32, shape (1, n_dim_coding)
    tbits = ((codes >> jnp.arange(N_DIM_CODING, dtype=jnp.int32)) & 1).astype(jnp.float32)
    tbits = tbits.reshape(1, N_DIM_CODING)
    t = _leaky(tbits @ t1w + t1b)
    t = _leaky(t @ t2w + t2b)
    return (t @ t3wt + t3b).astype(jnp.float32)              # (1, 32)


def vae_forward(packed, x, task_id, eps, *, tile_b=None):
    """Flatten NCHW input, fold the task branch, run the gridded Pallas kernel."""
    B = x.shape[0]
    x_flat = x.reshape(B, N_FEAT).astype(jnp.float32)
    eps = eps.astype(jnp.float32)

    # Batch tile: multiple of 8 sublanes; cap at 256 (MXU-row aligned, and keeps
    # double-buffered (TB,784) in/out tiles far below v7x's 64 MiB VMEM).
    if tile_b is None:
        tile_b = 256 if B >= 256 else _round_up(B, 8)
    tile_b = max(8, _round_up(int(tile_b), 8))
    Bp = _round_up(B, tile_b)
    if Bp != B:
        x_flat = jnp.pad(x_flat, ((0, Bp - B), (0, 0)))
        eps = jnp.pad(eps, ((0, Bp - B), (0, 0)))

    weights = packed['weights']
    bpack = packed['bpack']
    t3beff = _task_bias(packed['task'], task_id)

    grid = (Bp // tile_b,)

    def row_spec(feat):
        return pl.BlockSpec((tile_b, feat), lambda i: (i, 0))

    def const_spec(a):
        return pl.BlockSpec(a.shape, lambda i: (0, 0))

    in_specs = ([row_spec(N_FEAT), row_spec(LATENT)]
                + [const_spec(w) for w in weights]
                + [const_spec(bpack), const_spec(t3beff)])

    out_shapes = (
        jax.ShapeDtypeStruct((Bp, N_FEAT), jnp.float32),       # recon (flat)
        jax.ShapeDtypeStruct((Bp, 3 * LATENT), jnp.float32),   # [means|log_var|z]
    )
    out_specs = (row_spec(N_FEAT), row_spec(3 * LATENT))

    weight_bytes = sum(int(w.size) * w.dtype.itemsize for w in weights)
    flops = int(Bp) * sum(2 * w.shape[0] * w.shape[1] for w in weights)
    cost = pl.CostEstimate(
        flops=flops,
        transcendentals=int(Bp) * (LATENT + 2 * N_FEAT),
        bytes_accessed=int(weight_bytes + bpack.size * 4 + t3beff.size * 4
                           + Bp * (N_FEAT * 4 + LATENT * 4          # inputs
                                   + N_FEAT * 4 + 3 * LATENT * 4)), # outputs
    )

    recon_flat, stats = pl.pallas_call(
        _vae_kernel,
        grid=grid,
        in_specs=in_specs,
        out_specs=out_specs,
        out_shape=out_shapes,
        compiler_params=pltpu.CompilerParams(
            dimension_semantics=("parallel",),          # v7x: shard batch over 2 TCs
            vmem_limit_bytes=32 * 1024 * 1024,
        ),
        cost_estimate=cost,
    )(x_flat, eps, *weights, bpack, t3beff)

    recon = recon_flat[:B].reshape(B, OUT_CH, IN_SIZE, IN_SIZE)  # x.view(B,1,28,28)
    means = stats[:B, 0:LATENT]
    log_var = stats[:B, LATENT:2 * LATENT]
    z = stats[:B, 2 * LATENT:3 * LATENT]
    return recon, means, log_var, z


if __name__ == "__main__":
    key = jax.random.PRNGKey(0)
    kp, kx, ke = jax.random.split(key, 3)

    raw_params = init_vae_params(kp)
    packed = prepare_params(raw_params)

    B = 16                                                 # multiple of 8 sublanes
    x = jax.random.uniform(kx, (B, 1, IN_SIZE, IN_SIZE), jnp.float32)   # NCHW input
    eps = jax.random.normal(ke, (B, LATENT), jnp.float32)               # explicit `noise`
    task_id = 3

    # tile_b=8 -> grid of 2 batch tiles (exercises the pipelined / parallel grid)
    recon, means, log_var, z = vae_forward(packed, x, task_id, eps, tile_b=8)
    jax.block_until_ready((recon, means, log_var, z))

    assert recon.shape == (B, 1, IN_SIZE, IN_SIZE)
    assert means.shape == (B, LATENT) and log_var.shape == (B, LATENT) and z.shape == (B, LATENT)
    assert bool(jnp.all(jnp.isfinite(recon))) and bool(jnp.all(jnp.isfinite(z)))
    print("KERNEL_OK")
</pallas_src>

<mosaic_0001>
module attributes {stable_mosaic.version = 11 : i64} {
  func.func @_vae_kernel(%arg0: i32, %arg1: memref<8x784xf32, #tpu.memory_space<vmem>>, %arg2: memref<8x8xf32, #tpu.memory_space<vmem>>, %arg3: memref<784x128xbf16, #tpu.memory_space<vmem>>, %arg4: memref<128x32xbf16, #tpu.memory_space<vmem>>, %arg5: memref<32x16xbf16, #tpu.memory_space<vmem>>, %arg6: memref<16x16xbf16, #tpu.memory_space<vmem>>, %arg7: memref<8x32xbf16, #tpu.memory_space<vmem>>, %arg8: memref<32x64xbf16, #tpu.memory_space<vmem>>, %arg9: memref<64x128xbf16, #tpu.memory_space<vmem>>, %arg10: memref<128x256xbf16, #tpu.memory_space<vmem>>, %arg11: memref<256x784xbf16, #tpu.memory_space<vmem>>, %arg12: memref<8x784xf32, #tpu.memory_space<vmem>>, %arg13: memref<1x32xf32, #tpu.memory_space<vmem>>, %arg14: memref<8x784xf32, #tpu.memory_space<vmem>>, %arg15: memref<8x24xf32, #tpu.memory_space<vmem>>) attributes {dimension_semantics = [#tpu.dimension_semantics<parallel>], iteration_bounds = array<i64: 2>, scalar_prefetch = 0 : i64, scratch_operands = 0 : i64, tpu.core_type = #tpu.core_type<tc>, window_params = [{transform_indices = @transform_0, window_bounds = array<i64: 8, 784>}, {transform_indices = @transform_1, window_bounds = array<i64: 8, 8>}, {pipeline_mode = #tpu.pipeline_mode<synchronous>, transform_indices = @transform_2, window_bounds = array<i64: 784, 128>}, {pipeline_mode = #tpu.pipeline_mode<synchronous>, transform_indices = @transform_3, window_bounds = array<i64: 128, 32>}, {pipeline_mode = #tpu.pipeline_mode<synchronous>, transform_indices = @transform_4, window_bounds = array<i64: 32, 16>}, {pipeline_mode = #tpu.pipeline_mode<synchronous>, transform_indices = @transform_5, window_bounds = array<i64: 16, 16>}, {pipeline_mode = #tpu.pipeline_mode<synchronous>, transform_indices = @transform_6, window_bounds = array<i64: 8, 32>}, {pipeline_mode = #tpu.pipeline_mode<synchronous>, transform_indices = @transform_7, window_bounds = array<i64: 32, 64>}, {pipeline_mode = #tpu.pipeline_mode<synchronous>, transform_indices = @transform_8, window_bounds = array<i64: 64, 128>}, {pipeline_mode = #tpu.pipeline_mode<synchronous>, transform_indices = @transform_9, window_bounds = array<i64: 128, 256>}, {pipeline_mode = #tpu.pipeline_mode<synchronous>, transform_indices = @transform_10, window_bounds = array<i64: 256, 784>}, {pipeline_mode = #tpu.pipeline_mode<synchronous>, transform_indices = @transform_11, window_bounds = array<i64: 8, 784>}, {pipeline_mode = #tpu.pipeline_mode<synchronous>, transform_indices = @transform_12, window_bounds = array<i64: 1, 32>}, {transform_indices = @transform_13, window_bounds = array<i64: 8, 784>}, {transform_indices = @transform_14, window_bounds = array<i64: 8, 24>}]} {
    %c0 = arith.constant 0 : index
    %c0_0 = arith.constant 0 : index
    %0 = vector.load %arg1[%c0, %c0_0] : memref<8x784xf32, #tpu.memory_space<vmem>>, vector<8x784xf32>
    %1 = arith.truncf %0 : vector<8x784xf32> to vector<8x784xbf16>
    %c0_1 = arith.constant 0 : index
    %c0_2 = arith.constant 0 : index
    %2 = vector.load %arg3[%c0_1, %c0_2] : memref<784x128xbf16, #tpu.memory_space<vmem>>, vector<784x128xbf16>
    %cst = arith.constant dense<0.000000e+00> : vector<8x128xf32>
    %3 = tpu.matmul %1, %2, %cst {dimension_numbers = #tpu.dot_dimension_numbers<[1], [0], [0], [1], [0, 0, 1, 1], [], []>} : vector<8x784xbf16>, vector<784x128xbf16>, vector<8x128xf32> -> vector<8x128xf32>
    %c0_3 = arith.constant 0 : index
    %c0_4 = arith.constant 0 : index
    %4 = vector.load %arg12[%c0_3, %c0_4] : memref<8x784xf32, #tpu.memory_space<vmem>>, vector<1x128xf32>
    %5 = vector.broadcast %4 : vector<1x128xf32> to vector<8x128xf32>
    %6 = arith.addf %3, %5 : vector<8x128xf32>
    %cst_5 = arith.constant 0.000000e+00 : f32
    %7 = vector.broadcast %cst_5 : f32 to vector<8x128xf32>
    %8 = arith.cmpf oge, %6, %7 : vector<8x128xf32>
    %cst_6 = arith.constant 0.00999999977 : f32
    %9 = vector.broadcast %cst_6 : f32 to vector<8x128xf32>
    %10 = arith.mulf %6, %9 : vector<8x128xf32>
    %11 = arith.select %8, %6, %10 : vector<8x128xi1>, vector<8x128xf32>
    %12 = arith.truncf %11 : vector<8x128xf32> to vector<8x128xbf16>
    %c0_7 = arith.constant 0 : index
    %c0_8 = arith.constant 0 : index
    %13 = vector.load %arg4[%c0_7, %c0_8] : memref<128x32xbf16, #tpu.memory_space<vmem>>, vector<128x32xbf16>
    %cst_9 = arith.constant dense<0.000000e+00> : vector<8x32xf32>
    %14 = tpu.matmul %12, %13, %cst_9 {dimension_numbers = #tpu.dot_dimension_numbers<[1], [0], [0], [1], [0, 0, 1, 1], [], []>} : vector<8x128xbf16>, vector<128x32xbf16>, vector<8x32xf32> -> vector<8x32xf32>
    %c1 = arith.constant 1 : index
    %c0_10 = arith.constant 0 : index
    %15 = vector.load %arg12[%c1, %c0_10] : memref<8x784xf32, #tpu.memory_space<vmem>>, vector<1x32xf32>
    %16 = vector.broadcast %15 : vector<1x32xf32> to vector<8x32xf32>
    %17 = arith.addf %14, %16 : vector<8x32xf32>
    %cst_11 = arith.constant 0.000000e+00 : f32
    %18 = vector.broadcast %cst_11 : f32 to vector<8x32xf32>
    %19 = arith.cmpf oge, %17, %18 : vector<8x32xf32>
    %cst_12 = arith.constant 0.00999999977 : f32
    %20 = vector.broadcast %cst_12 : f32 to vector<8x32xf32>
    %21 = arith.mulf %17, %20 : vector<8x32xf32>
    %22 = arith.select %19, %17, %21 : vector<8x32xi1>, vector<8x32xf32>
    %23 = arith.truncf %22 : vector<8x32xf32> to vector<8x32xbf16>
    %c0_13 = arith.constant 0 : index
    %c0_14 = arith.constant 0 : index
    %24 = vector.load %arg5[%c0_13, %c0_14] : memref<32x16xbf16, #tpu.memory_space<vmem>>, vector<32x16xbf16>
    %cst_15 = arith.constant dense<0.000000e+00> : vector<8x16xf32>
    %25 = tpu.matmul %23, %24, %cst_15 {dimension_numbers = #tpu.dot_dimension_numbers<[1], [0], [0], [1], [0, 0, 1, 1], [], []>} : vector<8x32xbf16>, vector<32x16xbf16>, vector<8x16xf32> -> vector<8x16xf32>
    %c2 = arith.constant 2 : index
    %c0_16 = arith.constant 0 : index
    %26 = vector.load %arg12[%c2, %c0_16] : memref<8x784xf32, #tpu.memory_space<vmem>>, vector<1x16xf32>
    %27 = vector.broadcast %26 : vector<1x16xf32> to vector<8x16xf32>
    %28 = arith.addf %25, %27 : vector<8x16xf32>
    %cst_17 = arith.constant 0.000000e+00 : f32
    %29 = vector.broadcast %cst_17 : f32 to vector<8x16xf32>
    %30 = arith.cmpf oge, %28, %29 : vector<8x16xf32>
    %cst_18 = arith.constant 0.00999999977 : f32
    %31 = vector.broadcast %cst_18 : f32 to vector<8x16xf32>
    %32 = arith.mulf %28, %31 : vector<8x16xf32>
    %33 = arith.select %30, %28, %32 : vector<8x16xi1>, vector<8x16xf32>
    %34 = arith.truncf %33 : vector<8x16xf32> to vector<8x16xbf16>
    %c0_19 = arith.constant 0 : index
    %c0_20 = arith.constant 0 : index
    %35 = vector.load %arg6[%c0_19, %c0_20] : memref<16x16xbf16, #tpu.memory_space<vmem>>, vector<16x16xbf16>
    %cst_21 = arith.constant dense<0.000000e+00> : vector<8x16xf32>
    %36 = tpu.matmul %34, %35, %cst_21 {dimension_numbers = #tpu.dot_dimension_numbers<[1], [0], [0], [1], [0, 0, 1, 1], [], []>} : vector<8x16xbf16>, vector<16x16xbf16>, vector<8x16xf32> -> vector<8x16xf32>
    %c3 = arith.constant 3 : index
    %c0_22 = arith.constant 0 : index
    %37 = vector.load %arg12[%c3, %c0_22] : memref<8x784xf32, #tpu.memory_space<vmem>>, vector<1x16xf32>
    %38 = vector.broadcast %37 : vector<1x16xf32> to vector<8x16xf32>
    %39 = arith.addf %36, %38 : vector<8x16xf32>
    %40 = vector.extract_strided_slice %39 {offsets = [0, 0], sizes = [8, 8], strides = [1, 1]} : vector<8x16xf32> to vector<8x8xf32>
    %41 = vector.extract_strided_slice %39 {offsets = [0, 8], sizes = [8, 8], strides = [1, 1]} : vector<8x16xf32> to vector<8x8xf32>
    %c0_23 = arith.constant 0 : index
    %c0_24 = arith.constant 0 : index
    %42 = vector.load %arg2[%c0_23, %c0_24] : memref<8x8xf32, #tpu.memory_space<vmem>>, vector<8x8xf32>
    %cst_25 = arith.constant 5.000000e-01 : f32
    %43 = vector.broadcast %cst_25 : f32 to vector<8x8xf32>
    %44 = arith.mulf %43, %41 : vector<8x8xf32>
    %45 = math.exp %44 : vector<8x8xf32>
    %46 = arith.mulf %42, %45 : vector<8x8xf32>
    %47 = arith.addf %46, %40 : vector<8x8xf32>
    %48 = arith.truncf %47 : vector<8x8xf32> to vector<8x8xbf16>
    %c0_26 = arith.constant 0 : index
    %c0_27 = arith.constant 0 : index
    %49 = vector.load %arg7[%c0_26, %c0_27] : memref<8x32xbf16, #tpu.memory_space<vmem>>, vector<8x32xbf16>
    %cst_28 = arith.constant dense<0.000000e+00> : vector<8x32xf32>
    %50 = tpu.matmul %48, %49, %cst_28 {dimension_numbers = #tpu.dot_dimension_numbers<[1], [0], [0], [1], [0, 0, 1, 1], [], []>} : vector<8x8xbf16>, vector<8x32xbf16>, vector<8x32xf32> -> vector<8x32xf32>
    %c0_29 = arith.constant 0 : index
    %c0_30 = arith.constant 0 : index
    %51 = vector.load %arg13[%c0_29, %c0_30] : memref<1x32xf32, #tpu.memory_space<vmem>>, vector<1x32xf32>
    %52 = vector.broadcast %51 : vector<1x32xf32> to vector<8x32xf32>
    %53 = arith.addf %50, %52 : vector<8x32xf32>
    %cst_31 = arith.constant 0.000000e+00 : f32
    %54 = vector.broadcast %cst_31 : f32 to vector<8x32xf32>
    %55 = arith.cmpf oge, %53, %54 : vector<8x32xf32>
    %cst_32 = arith.constant 0.00999999977 : f32
    %56 = vector.broadcast %cst_32 : f32 to vector<8x32xf32>
    %57 = arith.mulf %53, %56 : vector<8x32xf32>
    %58 = arith.select %55, %53, %57 : vector<8x32xi1>, vector<8x32xf32>
    %59 = arith.truncf %58 : vector<8x32xf32> to vector<8x32xbf16>
    %c0_33 = arith.constant 0 : index
    %c0_34 = arith.constant 0 : index
    %60 = vector.load %arg8[%c0_33, %c0_34] : memref<32x64xbf16, #tpu.memory_space<vmem>>, vector<32x64xbf16>
    %cst_35 = arith.constant dense<0.000000e+00> : vector<8x64xf32>
    %61 = tpu.matmul %59, %60, %cst_35 {dimension_numbers = #tpu.dot_dimension_numbers<[1], [0], [0], [1], [0, 0, 1, 1], [], []>} : vector<8x32xbf16>, vector<32x64xbf16>, vector<8x64xf32> -> vector<8x64xf32>
    %c4 = arith.constant 4 : index
    %c0_36 = arith.constant 0 : index
    %62 = vector.load %arg12[%c4, %c0_36] : memref<8x784xf32, #tpu.memory_space<vmem>>, vector<1x64xf32>
    %63 = vector.broadcast %62 : vector<1x64xf32> to vector<8x64xf32>
    %64 = arith.addf %61, %63 : vector<8x64xf32>
    %65 = arith.truncf %64 : vector<8x64xf32> to vector<8x64xbf16>
    %c0_37 = arith.constant 0 : index
    %c0_38 = arith.constant 0 : index
    %66 = vector.load %arg9[%c0_37, %c0_38] : memref<64x128xbf16, #tpu.memory_space<vmem>>, vector<64x128xbf16>
    %cst_39 = arith.constant dense<0.000000e+00> : vector<8x128xf32>
    %67 = tpu.matmul %65, %66, %cst_39 {dimension_numbers = #tpu.dot_dimension_numbers<[1], [0], [0], [1], [0, 0, 1, 1], [], []>} : vector<8x64xbf16>, vector<64x128xbf16>, vector<8x128xf32> -> vector<8x128xf32>
    %c5 = arith.constant 5 : index
    %c0_40 = arith.constant 0 : index
    %68 = vector.load %arg12[%c5, %c0_40] : memref<8x784xf32, #tpu.memory_space<vmem>>, vector<1x128xf32>
    %69 = vector.broadcast %68 : vector<1x128xf32> to vector<8x128xf32>
    %70 = arith.addf %67, %69 : vector<8x128xf32>
    %cst_41 = arith.constant 0.000000e+00 : f32
    %71 = vector.broadcast %cst_41 : f32 to vector<8x128xf32>
    %72 = arith.cmpf oge, %70, %71 : vector<8x128xf32>
    %cst_42 = arith.constant 0.00999999977 : f32
    %73 = vector.broadcast %cst_42 : f32 to vector<8x128xf32>
    %74 = arith.mulf %70, %73 : vector<8x128xf32>
    %75 = arith.select %72, %70, %74 : vector<8x128xi1>, vector<8x128xf32>
    %76 = arith.truncf %75 : vector<8x128xf32> to vector<8x128xbf16>
    %c0_43 = arith.constant 0 : index
    %c0_44 = arith.constant 0 : index
    %77 = vector.load %arg10[%c0_43, %c0_44] : memref<128x256xbf16, #tpu.memory_space<vmem>>, vector<128x256xbf16>
    %cst_45 = arith.constant dense<0.000000e+00> : vector<8x256xf32>
    %78 = tpu.matmul %76, %77, %cst_45 {dimension_numbers = #tpu.dot_dimension_numbers<[1], [0], [0], [1], [0, 0, 1, 1], [], []>} : vector<8x128xbf16>, vector<128x256xbf16>, vector<8x256xf32> -> vector<8x256xf32>
    %c6 = arith.constant 6 : index
    %c0_46 = arith.constant 0 : index
    %79 = vector.load %arg12[%c6, %c0_46] : memref<8x784xf32, #tpu.memory_space<vmem>>, vector<1x256xf32>
    %80 = vector.broadcast %79 : vector<1x256xf32> to vector<8x256xf32>
    %81 = arith.addf %78, %80 : vector<8x256xf32>
    %cst_47 = arith.constant 0.000000e+00 : f32
    %82 = vector.broadcast %cst_47 : f32 to vector<8x256xf32>
    %83 = arith.cmpf oge, %81, %82 : vector<8x256xf32>
    %cst_48 = arith.constant 0.00999999977 : f32
    %84 = vector.broadcast %cst_48 : f32 to vector<8x256xf32>
    %85 = arith.mulf %81, %84 : vector<8x256xf32>
    %86 = arith.select %83, %81, %85 : vector<8x256xi1>, vector<8x256xf32>
    %87 = arith.truncf %86 : vector<8x256xf32> to vector<8x256xbf16>
    %c0_49 = arith.constant 0 : index
    %c0_50 = arith.constant 0 : index
    %88 = vector.load %arg11[%c0_49, %c0_50] : memref<256x784xbf16, #tpu.memory_space<vmem>>, vector<256x784xbf16>
    %cst_51 = arith.constant dense<0.000000e+00> : vector<8x784xf32>
    %89 = tpu.matmul %87, %88, %cst_51 {dimension_numbers = #tpu.dot_dimension_numbers<[1], [0], [0], [1], [0, 0, 1, 1], [], []>} : vector<8x256xbf16>, vector<256x784xbf16>, vector<8x784xf32> -> vector<8x784xf32>
    %c7 = arith.constant 7 : index
    %c0_52 = arith.constant 0 : index
    %90 = vector.load %arg12[%c7, %c0_52] : memref<8x784xf32, #tpu.memory_space<vmem>>, vector<1x784xf32>
    %91 = vector.broadcast %90 : vector<1x784xf32> to vector<8x784xf32>
    %92 = arith.addf %89, %91 : vector<8x784xf32>
    %cst_53 = arith.constant 0.000000e+00 : f32
    %93 = vector.broadcast %cst_53 : f32 to vector<8x784xf32>
    %94 = arith.subf %93, %92 : vector<8x784xf32>
    %95 = math.exp %94 : vector<8x784xf32>
    %cst_54 = arith.constant 1.000000e+00 : f32
    %96 = vector.broadcast %cst_54 : f32 to vector<8x784xf32>
    %97 = arith.addf %96, %95 : vector<8x784xf32>
    %98 = tpu.reciprocal %97 {approx = true} : vector<8x784xf32> -> vector<8x784xf32>
    %c0_55 = arith.constant 0 : index
    %c0_56 = arith.constant 0 : index
    %99 = vector.load %arg14[%c0_55, %c0_56] : memref<8x784xf32, #tpu.memory_space<vmem>>, vector<8x784xf32>
    tpu.vector_store %arg14[%c0_55, %c0_56], %98 {strides = array<i32>} : memref<8x784xf32, #tpu.memory_space<vmem>>, vector<8x784xf32>,
    %100 = tpu.concatenate %40, %41, %47 in 1 : vector<8x8xf32>, vector<8x8xf32>, vector<8x8xf32> -> vector<8x24xf32>
    %c0_57 = arith.constant 0 : index
    %c0_58 = arith.constant 0 : index
    %101 = vector.load %arg15[%c0_57, %c0_58] : memref<8x24xf32, #tpu.memory_space<vmem>>, vector<8x24xf32>
    tpu.vector_store %arg15[%c0_57, %c0_58], %100 {strides = array<i32>} : memref<8x24xf32, #tpu.memory_space<vmem>>, vector<8x24xf32>,
    return
  }
  func.func @transform_0(%arg0: i32) -> (i32, i32) {
    %c0_i32 = arith.constant 0 : i32
    %c0_i32_0 = arith.constant 0 : i32
    return %arg0, %c0_i32 : i32, i32
  }
  func.func @transform_1(%arg0: i32) -> (i32, i32) {
    %c0_i32 = arith.constant 0 : i32
    %c0_i32_0 = arith.constant 0 : i32
    return %arg0, %c0_i32 : i32, i32
  }
  func.func @transform_2(%arg0: i32) -> (i32, i32) {
    %c0_i32 = arith.constant 0 : i32
    %c0_i32_0 = arith.constant 0 : i32
    %c0_i32_1 = arith.constant 0 : i32
    return %c0_i32, %c0_i32_0 : i32, i32
  }
  func.func @transform_3(%arg0: i32) -> (i32, i32) {
    %c0_i32 = arith.constant 0 : i32
    %c0_i32_0 = arith.constant 0 : i32
    %c0_i32_1 = arith.constant 0 : i32
    return %c0_i32, %c0_i32_0 : i32, i32
  }
  func.func @transform_4(%arg0: i32) -> (i32, i32) {
    %c0_i32 = arith.constant 0 : i32
    %c0_i32_0 = arith.constant 0 : i32
    %c0_i32_1 = arith.constant 0 : i32
    return %c0_i32, %c0_i32_0 : i32, i32
  }
  func.func @transform_5(%arg0: i32) -> (i32, i32) {
    %c0_i32 = arith.constant 0 : i32
    %c0_i32_0 = arith.constant 0 : i32
    %c0_i32_1 = arith.constant 0 : i32
    return %c0_i32, %c0_i32_0 : i32, i32
  }
  func.func @transform_6(%arg0: i32) -> (i32, i32) {
    %c0_i32 = arith.constant 0 : i32
    %c0_i32_0 = arith.constant 0 : i32
    %c0_i32_1 = arith.constant 0 : i32
    return %c0_i32, %c0_i32_0 : i32, i32
  }
  func.func @transform_7(%arg0: i32) -> (i32, i32) {
    %c0_i32 = arith.constant 0 : i32
    %c0_i32_0 = arith.constant 0 : i32
    %c0_i32_1 = arith.constant 0 : i32
    return %c0_i32, %c0_i32_0 : i32, i32
  }
  func.func @transform_8(%arg0: i32) -> (i32, i32) {
    %c0_i32 = arith.constant 0 : i32
    %c0_i32_0 = arith.constant 0 : i32
    %c0_i32_1 = arith.constant 0 : i32
    return %c0_i32, %c0_i32_0 : i32, i32
  }
  func.func @transform_9(%arg0: i32) -> (i32, i32) {
    %c0_i32 = arith.constant 0 : i32
    %c0_i32_0 = arith.constant 0 : i32
    %c0_i32_1 = arith.constant 0 : i32
    return %c0_i32, %c0_i32_0 : i32, i32
  }
  func.func @transform_10(%arg0: i32) -> (i32, i32) {
    %c0_i32 = arith.constant 0 : i32
    %c0_i32_0 = arith.constant 0 : i32
    %c0_i32_1 = arith.constant 0 : i32
    return %c0_i32, %c0_i32_0 : i32, i32
  }
  func.func @transform_11(%arg0: i32) -> (i32, i32) {
    %c0_i32 = arith.constant 0 : i32
    %c0_i32_0 = arith.constant 0 : i32
    %c0_i32_1 = arith.constant 0 : i32
    return %c0_i32, %c0_i32_0 : i32, i32
  }
  func.func @transform_12(%arg0: i32) -> (i32, i32) {
    %c0_i32 = arith.constant 0 : i32
    %c0_i32_0 = arith.constant 0 : i32
    %c0_i32_1 = arith.constant 0 : i32
    return %c0_i32, %c0_i32_0 : i32, i32
  }
  func.func @transform_13(%arg0: i32) -> (i32, i32) {
    %c0_i32 = arith.constant 0 : i32
    %c0_i32_0 = arith.constant 0 : i32
    return %arg0, %c0_i32 : i32, i32
  }
  func.func @transform_14(%arg0: i32) -> (i32, i32) {
    %c0_i32 = arith.constant 0 : i32
    %c0_i32_0 = arith.constant 0 : i32
    return %arg0, %c0_i32 : i32, i32
  }
}

</mosaic_0001>

<llo_original>
// kernel: tpu_custom_call.1
$region0: #{tpu_custom_call.1}
  #allocation0 [shape = 'u32[]', space=smem, size = 0x4, offset = 0x4, fixed_abs, tag = 'smem constant byte address 0x4 - core index']
  #allocation1 [shape = 'u32[144,128]{1,0:T(1,128)}', space=vmem, size = 0x12000, scoped, tag = 'internal scratch']
  %s0 = inlined_call_operand.vmem [shape: f32[16,784], index: 0, kind: input, shape index: {}]
  %s1 = inlined_call_operand.vmem [shape: f32[16,8], index: 1, kind: input, shape index: {}]
  %s2 = inlined_call_operand.vmem [shape: bf16[784,128], index: 2, kind: input, shape index: {}]
  %s3 = inlined_call_operand.vmem [shape: bf16[128,32], index: 3, kind: input, shape index: {}]
  %s4 = inlined_call_operand.vmem [shape: bf16[32,16], index: 4, kind: input, shape index: {}]
  %s5 = inlined_call_operand.vmem [shape: bf16[16,16], index: 5, kind: input, shape index: {}]
  %s6 = inlined_call_operand.vmem [shape: bf16[8,32], index: 6, kind: input, shape index: {}]
  %s7 = inlined_call_operand.vmem [shape: bf16[32,64], index: 7, kind: input, shape index: {}]
  %s8 = inlined_call_operand.vmem [shape: bf16[64,128], index: 8, kind: input, shape index: {}]
  %s9 = inlined_call_operand.vmem [shape: bf16[128,256], index: 9, kind: input, shape index: {}]
  %s10 = inlined_call_operand.vmem [shape: bf16[256,784], index: 10, kind: input, shape index: {}]
  %s11 = inlined_call_operand.vmem [shape: f32[8,784], index: 11, kind: input, shape index: {}]
  %s12 = inlined_call_operand.vmem [shape: f32[1,32], index: 12, kind: input, shape index: {}]
  %s13 = inlined_call_operand.hbm [shape: f32[16,784], index: 13, kind: output, shape index: {0}]
  %s14 = inlined_call_operand.hbm [shape: f32[16,24], index: 14, kind: output, shape index: {1}]
  %15 = xla_tuple %s13, %s14
  %s16 = sld [smem:[#allocation0]]
  $region93: #{tpu_custom_call.1} parent=0
    _
  %s18 = ssub.s32 1, %s16
  %s19 = scalar_select 0, %s18, %s16
  $region1: #{tpu_custom_call.1} parent=0
    #allocation2 [shape = 'u8[57344]{0}', space=vmem, size = 0xe000, scoped, tag = 'output window, operand 0']
    #allocation3 [shape = 's32[2]{0}', space=sflag, size = 0x8, scoped, tag = 'scoped memory for tpu_custom_call.1']
    #allocation4 [shape = 'u8[8192]{0}', space=vmem, size = 0x2000, scoped, tag = 'output window, operand 1']
    #allocation5 [shape = 's32[2]{0}', space=sflag, size = 0x8, scoped, tag = 'scoped memory for tpu_custom_call.1']
    %20 = vsyncpa [#allocation3], 0
    %s21 = scalar_lea.sflag [#allocation3], 1
    %22 = vsyncpa %s21, 0
    %23 = vsyncpa [#allocation5], 0
    %s24 = scalar_lea.sflag [#allocation5], 1
    %25 = vsyncpa %s24, 0
    loop: start=0, step=1, limit=4
    $region2: #{tpu_custom_call.1} parent=1 // loop_pre_header
      _
    $region3: #{tpu_custom_call.1} parent=1 // loop_header
      %s27 = sphi 0, %s31
      %p28 = scmp.ge.s32.totalorder %s27, 4
      %s37 = sphi 0, %s39
      %s40 = sphi 0, %s37
      %s41 = sphi 0, %s40
      %s57 = sphi 0, %s41
      %s63 = sphi 0, %s65
      %s66 = sphi 0, %s63
      %s67 = sphi 0, %s66
      %s83 = sphi 0, %s67
      %s87 = sphi 0, %s87
      %s89 = sphi 0, %s87
      %s90 = sphi 0, %s89
      %s104 = sphi 0, %s90
      %s108 = sphi 0, %s108
      %s110 = sphi 0, %s108
      %s111 = sphi 0, %s110
      %s125 = sphi 0, %s111
      %s129 = sphi 0, %s129
      %s131 = sphi 0, %s129
      %s132 = sphi 0, %s131
      %s146 = sphi 0, %s132
      %s150 = sphi 0, %s150
      %s152 = sphi 0, %s150
      %s153 = sphi 0, %s152
      %s167 = sphi 0, %s153
      %s171 = sphi 0, %s171
      %s173 = sphi 0, %s171
      %s174 = sphi 0, %s173
      %s188 = sphi 0, %s174
      %s192 = sphi 0, %s192
      %s194 = sphi 0, %s192
      %s195 = sphi 0, %s194
      %s209 = sphi 0, %s195
      %s213 = sphi 0, %s213
      %s215 = sphi 0, %s213
      %s216 = sphi 0, %s215
      %s230 = sphi 0, %s216
      %s234 = sphi 0, %s234
      %s236 = sphi 0, %s234
      %s237 = sphi 0, %s236
      %s251 = sphi 0, %s237
      %s255 = sphi 0, %s255
      %s257 = sphi 0, %s255
      %s258 = sphi 0, %s257
      %s272 = sphi 0, %s258
      %s276 = sphi 0, %s276
      %s278 = sphi 0, %s276
      %s279 = sphi 0, %s278
      %s293 = sphi 0, %s279
      %s297 = sphi 0, %s297
      %s299 = sphi 0, %s297
      %s300 = sphi 0, %s299
      %s314 = sphi 0, %s300
      %s320 = sphi 0, %s322
      %s323 = sphi 0, %s320
      %s324 = sphi 0, %s323
      %s340 = sphi 0, %s324
      %s346 = sphi 0, %s348
      %s349 = sphi 0, %s346
      %s350 = sphi 0, %s349
      %s366 = sphi 0, %s350
    $region4: #{tpu_custom_call.1} parent=1 // loop_header_branch
      %30 = sbr.rel (%p28) target = $region8
    $region5: #{tpu_custom_call.1} parent=1 // loop_body
      %s32 = ssub.s32 %s27, 1
      %s33 = ssub.s32 %s27, 2
      %s34 = sadd.s32 %s27, 1
      %s35 = ssub.s32 %s27, %s34
      %p36 = scmp.eq.s32.totalorder %s35, 0
      %s38 = sadd.s32 %s37, 1
      %s39 = scalar_select %p36, %s37, %s38
      %p42 = pneg %p36
      %p43 = scmp.eq.s32.totalorder %s27, 1
      %p44 = por %p42, %p43
      %p45 = scmp.ne.s32.totalorder %s37, %s40
      %p46 = scmp.eq.s32.totalorder %s27, 0
      %p47 = por %p45, %p46
      %p48 = scmp.ne.s32.totalorder %s37, %s40
      %p49 = scmp.eq.s32.totalorder %s32, 1
      %p50 = por %p48, %p49
      %p51 = scmp.ne.s32.totalorder %s40, %s41
      %p52 = scmp.eq.s32.totalorder %s32, 0
      %p53 = por %p51, %p52
      %p54 = scmp.ne.s32.totalorder %s40, %s41
      %p55 = scmp.eq.s32.totalorder %s33, 1
      %p56 = por %p54, %p55
      %p58 = scmp.ne.s32.totalorder %s41, %s57
      %p59 = scmp.eq.s32.totalorder %s33, 0
      %p60 = por %p58, %p59
      %s61 = ssub.s32 %s27, %s34
      %p62 = scmp.eq.s32.totalorder %s61, 0
      %s64 = sadd.s32 %s63, 1
      %s65 = scalar_select %p62, %s63, %s64
      %p68 = pneg %p62
      %p69 = scmp.eq.s32.totalorder %s27, 1
      %p70 = por %p68, %p69
      %p71 = scmp.ne.s32.totalorder %s63, %s66
      %p72 = scmp.eq.s32.totalorder %s27, 0
      %p73 = por %p71, %p72
      %p74 = scmp.ne.s32.totalorder %s63, %s66
      %p75 = scmp.eq.s32.totalorder %s32, 1
      %p76 = por %p74, %p75
      %p77 = scmp.ne.s32.totalorder %s66, %s67
      %p78 = scmp.eq.s32.totalorder %s32, 0
      %p79 = por %p77, %p78
      %p80 = scmp.ne.s32.totalorder %s66, %s67
      %p81 = scmp.eq.s32.totalorder %s33, 1
      %p82 = por %p80, %p81
      %p84 = scmp.ne.s32.totalorder %s67, %s83
      %p85 = scmp.eq.s32.totalorder %s33, 0
      %p86 = por %p84, %p85
      %s88 = sadd.s32 %s87, 1
      %p91 = scmp.eq.s32.totalorder %s27, 1
      %p92 = scmp.ne.s32.totalorder %s87, %s89
      %p93 = scmp.eq.s32.totalorder %s27, 0
      %p94 = por %p92, %p93
      %p95 = scmp.ne.s32.totalorder %s87, %s89
      %p96 = scmp.eq.s32.totalorder %s32, 1
      %p97 = por %p95, %p96
      %p98 = scmp.ne.s32.totalorder %s89, %s90
      %p99 = scmp.eq.s32.totalorder %s32, 0
      %p100 = por %p98, %p99
      %p101 = scmp.ne.s32.totalorder %s89, %s90
      %p102 = scmp.eq.s32.totalorder %s33, 1
      %p103 = por %p101, %p102
      %p105 = scmp.ne.s32.totalorder %s90, %s104
      %p106 = scmp.eq.s32.totalorder %s33, 0
      %p107 = por %p105, %p106
      %s109 = sadd.s32 %s108, 1
      %p112 = scmp.eq.s32.totalorder %s27, 1
      %p113 = scmp.ne.s32.totalorder %s108, %s110
      %p114 = scmp.eq.s32.totalorder %s27, 0
      %p115 = por %p113, %p114
      %p116 = scmp.ne.s32.totalorder %s108, %s110
      %p117 = scmp.eq.s32.totalorder %s32, 1
      %p118 = por %p116, %p117
      %p119 = scmp.ne.s32.totalorder %s110, %s111
      %p120 = scmp.eq.s32.totalorder %s32, 0
      %p121 = por %p119, %p120
      %p122 = scmp.ne.s32.totalorder %s110, %s111
      %p123 = scmp.eq.s32.totalorder %s33, 1
      %p124 = por %p122, %p123
      %p126 = scmp.ne.s32.totalorder %s111, %s125
      %p127 = scmp.eq.s32.totalorder %s33, 0
      %p128 = por %p126, %p127
      %s130 = sadd.s32 %s129, 1
      %p133 = scmp.eq.s32.totalorder %s27, 1
      %p134 = scmp.ne.s32.totalorder %s129, %s131
      %p135 = scmp.eq.s32.totalorder %s27, 0
      %p136 = por %p134, %p135
      %p137 = scmp.ne.s32.totalorder %s129, %s131
      %p138 = scmp.eq.s32.totalorder %s32, 1
      %p139 = por %p137, %p138
      %p140 = scmp.ne.s32.totalorder %s131, %s132
      %p141 = scmp.eq.s32.totalorder %s32, 0
      %p142 = por %p140, %p141
      %p143 = scmp.ne.s32.totalorder %s131, %s132
      %p144 = scmp.eq.s32.totalorder %s33, 1
      %p145 = por %p143, %p144
      %p147 = scmp.ne.s32.totalorder %s132, %s146
      %p148 = scmp.eq.s32.totalorder %s33, 0
      %p149 = por %p147, %p148
      %s151 = sadd.s32 %s150, 1
      %p154 = scmp.eq.s32.totalorder %s27, 1
      %p155 = scmp.ne.s32.totalorder %s150, %s152
      %p156 = scmp.eq.s32.totalorder %s27, 0
      %p157 = por %p155, %p156
      %p158 = scmp.ne.s32.totalorder %s150, %s152
      %p159 = scmp.eq.s32.totalorder %s32, 1
      %p160 = por %p158, %p159
      %p161 = scmp.ne.s32.totalorder %s152, %s153
      %p162 = scmp.eq.s32.totalorder %s32, 0
      %p163 = por %p161, %p162
      %p164 = scmp.ne.s32.totalorder %s152, %s153
      %p165 = scmp.eq.s32.totalorder %s33, 1
      %p166 = por %p164, %p165
      %p168 = scmp.ne.s32.totalorder %s153, %s167
      %p169 = scmp.eq.s32.totalorder %s33, 0
      %p170 = por %p168, %p169
      %s172 = sadd.s32 %s171, 1
      %p175 = scmp.eq.s32.totalorder %s27, 1
      %p176 = scmp.ne.s32.totalorder %s171, %s173
      %p177 = scmp.eq.s32.totalorder %s27, 0
      %p178 = por %p176, %p177
      %p179 = scmp.ne.s32.totalorder %s171, %s173
      %p180 = scmp.eq.s32.totalorder %s32, 1
      %p181 = por %p179, %p180
      %p182 = scmp.ne.s32.totalorder %s173, %s174
      %p183 = scmp.eq.s32.totalorder %s32, 0
      %p184 = por %p182, %p183
      %p185 = scmp.ne.s32.totalorder %s173, %s174
      %p186 = scmp.eq.s32.totalorder %s33, 1
      %p187 = por %p185, %p186
      %p189 = scmp.ne.s32.totalorder %s174, %s188
      %p190 = scmp.eq.s32.totalorder %s33, 0
      %p191 = por %p189, %p190
      %s193 = sadd.s32 %s192, 1
      %p196 = scmp.eq.s32.totalorder %s27, 1
      %p197 = scmp.ne.s32.totalorder %s192, %s194
      %p198 = scmp.eq.s32.totalorder %s27, 0
      %p199 = por %p197, %p198
      %p200 = scmp.ne.s32.totalorder %s192, %s194
      %p201 = scmp.eq.s32.totalorder %s32, 1
      %p202 = por %p200, %p201
      %p203 = scmp.ne.s32.totalorder %s194, %s195
      %p204 = scmp.eq.s32.totalorder %s32, 0
      %p205 = por %p203, %p204
      %p206 = scmp.ne.s32.totalorder %s194, %s195
      %p207 = scmp.eq.s32.totalorder %s33, 1
      %p208 = por %p206, %p207
      %p210 = scmp.ne.s32.totalorder %s195, %s209
      %p211 = scmp.eq.s32.totalorder %s33, 0
      %p212 = por %p210, %p211
      %s214 = sadd.s32 %s213, 1
      %p217 = scmp.eq.s32.totalorder %s27, 1
      %p218 = scmp.ne.s32.totalorder %s213, %s215
      %p219 = scmp.eq.s32.totalorder %s27, 0
      %p220 = por %p218, %p219
      %p221 = scmp.ne.s32.totalorder %s213, %s215
      %p222 = scmp.eq.s32.totalorder %s32, 1
      %p223 = por %p221, %p222
      %p224 = scmp.ne.s32.totalorder %s215, %s216
      %p225 = scmp.eq.s32.totalorder %s32, 0
      %p226 = por %p224, %p225
      %p227 = scmp.ne.s32.totalorder %s215, %s216
      %p228 = scmp.eq.s32.totalorder %s33, 1
      %p229 = por %p227, %p228
      %p231 = scmp.ne.s32.totalorder %s216, %s230
      %p232 = scmp.eq.s32.totalorder %s33, 0
      %p233 = por %p231, %p232
      %s235 = sadd.s32 %s234, 1
      %p238 = scmp.eq.s32.totalorder %s27, 1
      %p239 = scmp.ne.s32.totalorder %s234, %s236
      %p240 = scmp.eq.s32.totalorder %s27, 0
      %p241 = por %p239, %p240
      %p242 = scmp.ne.s32.totalorder %s234, %s236
      %p243 = scmp.eq.s32.totalorder %s32, 1
      %p244 = por %p242, %p243
      %p245 = scmp.ne.s32.totalorder %s236, %s237
      %p246 = scmp.eq.s32.totalorder %s32, 0
      %p247 = por %p245, %p246
      %p248 = scmp.ne.s32.totalorder %s236, %s237
      %p249 = scmp.eq.s32.totalorder %s33, 1
      %p250 = por %p248, %p249
      %p252 = scmp.ne.s32.totalorder %s237, %s251
      %p253 = scmp.eq.s32.totalorder %s33, 0
      %p254 = por %p252, %p253
      %s256 = sadd.s32 %s255, 1
      %p259 = scmp.eq.s32.totalorder %s27, 1
      %p260 = scmp.ne.s32.totalorder %s255, %s257
      %p261 = scmp.eq.s32.totalorder %s27, 0
      %p262 = por %p260, %p261
      %p263 = scmp.ne.s32.totalorder %s255, %s257
      %p264 = scmp.eq.s32.totalorder %s32, 1
      %p265 = por %p263, %p264
      %p266 = scmp.ne.s32.totalorder %s257, %s258
      %p267 = scmp.eq.s32.totalorder %s32, 0
      %p268 = por %p266, %p267
      %p269 = scmp.ne.s32.totalorder %s257, %s258
      %p270 = scmp.eq.s32.totalorder %s33, 1
      %p271 = por %p269, %p270
      %p273 = scmp.ne.s32.totalorder %s258, %s272
      %p274 = scmp.eq.s32.totalorder %s33, 0
      %p275 = por %p273, %p274
      %s277 = sadd.s32 %s276, 1
      %p280 = scmp.eq.s32.totalorder %s27, 1
      %p281 = scmp.ne.s32.totalorder %s276, %s278
      %p282 = scmp.eq.s32.totalorder %s27, 0
      %p283 = por %p281, %p282
      %p284 = scmp.ne.s32.totalorder %s276, %s278
      %p285 = scmp.eq.s32.totalorder %s32, 1
      %p286 = por %p284, %p285
      %p287 = scmp.ne.s32.totalorder %s278, %s279
      %p288 = scmp.eq.s32.totalorder %s32, 0
      %p289 = por %p287, %p288
      %p290 = scmp.ne.s32.totalorder %s278, %s279
      %p291 = scmp.eq.s32.totalorder %s33, 1
      %p292 = por %p290, %p291
      %p294 = scmp.ne.s32.totalorder %s279, %s293
      %p295 = scmp.eq.s32.totalorder %s33, 0
      %p296 = por %p294, %p295
      %s298 = sadd.s32 %s297, 1
      %p301 = scmp.eq.s32.totalorder %s27, 1
      %p302 = scmp.ne.s32.totalorder %s297, %s299
      %p303 = scmp.eq.s32.totalorder %s27, 0
      %p304 = por %p302, %p303
      %p305 = scmp.ne.s32.totalorder %s297, %s299
      %p306 = scmp.eq.s32.totalorder %s32, 1
      %p307 = por %p305, %p306
      %p308 = scmp.ne.s32.totalorder %s299, %s300
      %p309 = scmp.eq.s32.totalorder %s32, 0
      %p310 = por %p308, %p309
      %p311 = scmp.ne.s32.totalorder %s299, %s300
      %p312 = scmp.eq.s32.totalorder %s33, 1
      %p313 = por %p311, %p312
      %p315 = scmp.ne.s32.totalorder %s300, %s314
      %p316 = scmp.eq.s32.totalorder %s33, 0
      %p317 = por %p315, %p316
      %s318 = ssub.s32 %s27, %s34
      %p319 = scmp.eq.s32.totalorder %s318, 0
      %s321 = sadd.s32 %s320, 1
      %s322 = scalar_select %p319, %s320, %s321
      %p325 = pneg %p319
      %p326 = scmp.eq.s32.totalorder %s27, 1
      %p327 = por %p325, %p326
      %p328 = scmp.ne.s32.totalorder %s320, %s323
      %p329 = scmp.eq.s32.totalorder %s27, 0
      %p330 = por %p328, %p329
      %p331 = scmp.ne.s32.totalorder %s320, %s323
      %p332 = scmp.eq.s32.totalorder %s32, 1
      %p333 = por %p331, %p332
      %p334 = scmp.ne.s32.totalorder %s323, %s324
      %p335 = scmp.eq.s32.totalorder %s32, 0
      %p336 = por %p334, %p335
      %p337 = scmp.ne.s32.totalorder %s323, %s324
      %p338 = scmp.eq.s32.totalorder %s33, 1
      %p339 = por %p337, %p338
      %p341 = scmp.ne.s32.totalorder %s324, %s340
      %p342 = scmp.eq.s32.totalorder %s33, 0
      %p343 = por %p341, %p342
      %s344 = ssub.s32 %s27, %s34
      %p345 = scmp.eq.s32.totalorder %s344, 0
      %s347 = sadd.s32 %s346, 1
      %s348 = scalar_select %p345, %s346, %s347
      %p351 = pneg %p345
      %p352 = scmp.eq.s32.totalorder %s27, 1
      %p353 = por %p351, %p352
      %p354 = scmp.ne.s32.totalorder %s346, %s349
      %p355 = scmp.eq.s32.totalorder %s27, 0
      %p356 = por %p354, %p355
      %p357 = scmp.ne.s32.totalorder %s346, %s349
      %p358 = scmp.eq.s32.totalorder %s32, 1
      %p359 = por %p357, %p358
      %p360 = scmp.ne.s32.totalorder %s349, %s350
      %p361 = scmp.eq.s32.totalorder %s32, 0
      %p362 = por %p360, %p361
      %p363 = scmp.ne.s32.totalorder %s349, %s350
      %p364 = scmp.eq.s32.totalorder %s33, 1
      %p365 = por %p363, %p364
      %p367 = scmp.ne.s32.totalorder %s350, %s366
      %p368 = scmp.eq.s32.totalorder %s33, 0
      %p369 = por %p367, %p368
      %p370 = scmp.le.s32.totalorder 1, %s27
      %p371 = scmp.lt.s32.totalorder %s27, 3
      %p372 = pnand %p370, %p371
      %p373 = pneg %p372
      // Predicated region
      $region9: #{tpu_custom_call.1} parent=5 // pred_check
        _
      $region10: #{tpu_custom_call.1} parent=5 // pred_check_branch
        %375 = sbr.rel (%p372) target = $region12
      $region11: #{tpu_custom_call.1} parent=5 // pred_region
        %s376 = ssub.s32 %s27, 1
        // Predicated region
        $region13: #{tpu_custom_call.1} parent=11 // pred_check
          %p377 = pneg %p100
        $region14: #{tpu_custom_call.1} parent=11 // pred_check_branch
          %379 = sbr.rel (%p377) target = $region16
        $region15: #{tpu_custom_call.1} parent=11 // pred_region
          _
        $region16: #{tpu_custom_call.1} parent=11 // pred_fallthru
          _
        // Predicated region
        $region17: #{tpu_custom_call.1} parent=11 // pred_check
          %p380 = pneg %p121
        $region18: #{tpu_custom_call.1} parent=11 // pred_check_branch
          %382 = sbr.rel (%p380) target = $region20
        $region19: #{tpu_custom_call.1} parent=11 // pred_region
          _
        $region20: #{tpu_custom_call.1} parent=11 // pred_fallthru
          _
        // Predicated region
        $region21: #{tpu_custom_call.1} parent=11 // pred_check
          %p383 = pneg %p142
        $region22: #{tpu_custom_call.1} parent=11 // pred_check_branch
          %385 = sbr.rel (%p383) target = $region24
        $region23: #{tpu_custom_call.1} parent=11 // pred_region
          _
        $region24: #{tpu_custom_call.1} parent=11 // pred_fallthru
          _
        // Predicated region
        $region25: #{tpu_custom_call.1} parent=11 // pred_check
          %p386 = pneg %p163
        $region26: #{tpu_custom_call.1} parent=11 // pred_check_branch
          %388 = sbr.rel (%p386) target = $region28
        $region27: #{tpu_custom_call.1} parent=11 // pred_region
          _
        $region28: #{tpu_custom_call.1} parent=11 // pred_fallthru
          _
        // Predicated region
        $region29: #{tpu_custom_call.1} parent=11 // pred_check
          %p389 = pneg %p184
        $region30: #{tpu_custom_call.1} parent=11 // pred_check_branch
          %391 = sbr.rel (%p389) target = $region32
        $region31: #{tpu_custom_call.1} parent=11 // pred_region
          _
        $region32: #{tpu_custom_call.1} parent=11 // pred_fallthru
          _
        // Predicated region
        $region33: #{tpu_custom_call.1} parent=11 // pred_check
          %p392 = pneg %p205
        $region34: #{tpu_custom_call.1} parent=11 // pred_check_branch
          %394 = sbr.rel (%p392) target = $region36
        $region35: #{tpu_custom_call.1} parent=11 // pred_region
          _
        $region36: #{tpu_custom_call.1} parent=11 // pred_fallthru
          _
        // Predicated region
        $region37: #{tpu_custom_call.1} parent=11 // pred_check
          %p395 = pneg %p226
        $region38: #{tpu_custom_call.1} parent=11 // pred_check_branch
          %397 = sbr.rel (%p395) target = $region40
        $region39: #{tpu_custom_call.1} parent=11 // pred_region
          _
        $region40: #{tpu_custom_call.1} parent=11 // pred_fallthru
          _
        // Predicated region
        $region41: #{tpu_custom_call.1} parent=11 // pred_check
          %p398 = pneg %p247
        $region42: #{tpu_custom_call.1} parent=11 // pred_check_branch
          %400 = sbr.rel (%p398) target = $region44
        $region43: #{tpu_custom_call.1} parent=11 // pred_region
          _
        $region44: #{tpu_custom_call.1} parent=11 // pred_fallthru
          _
        // Predicated region
        $region45: #{tpu_custom_call.1} parent=11 // pred_check
          %p401 = pneg %p268
        $region46: #{tpu_custom_call.1} parent=11 // pred_check_branch
          %403 = sbr.rel (%p401) target = $region48
        $region47: #{tpu_custom_call.1} parent=11 // pred_region
          _
        $region48: #{tpu_custom_call.1} parent=11 // pred_fallthru
          _
        // Predicated region
        $region49: #{tpu_custom_call.1} parent=11 // pred_check
          %p404 = pneg %p289
        $region50: #{tpu_custom_call.1} parent=11 // pred_check_branch
          %406 = sbr.rel (%p404) target = $region52
        $region51: #{tpu_custom_call.1} parent=11 // pred_region
          _
        $region52: #{tpu_custom_call.1} parent=11 // pred_fallthru
          _
        // Predicated region
        $region53: #{tpu_custom_call.1} parent=11 // pred_check
          %p407 = pneg %p310
        $region54: #{tpu_custom_call.1} parent=11 // pred_check_branch
          %409 = sbr.rel (%p407) target = $region56
        $region55: #{tpu_custom_call.1} parent=11 // pred_region
          _
        $region56: #{tpu_custom_call.1} parent=11 // pred_fallthru
          _
      $region12: #{tpu_custom_call.1} parent=5 // pred_fallthru
        _
      %p410 = scmp.lt.s32.totalorder %s27, 2
      // Predicated region
      $region57: #{tpu_custom_call.1} parent=5 // pred_check
        %p411 = pneg %p410
      $region58: #{tpu_custom_call.1} parent=5 // pred_check_branch
        %413 = sbr.rel (%p411) target = $region60
      $region59: #{tpu_custom_call.1} parent=5 // pred_region
        // Predicated region
        $region61: #{tpu_custom_call.1} parent=59 // pred_check
          %p414 = pneg %p47
        $region62: #{tpu_custom_call.1} parent=59 // pred_check_branch
          %416 = sbr.rel (%p414) target = $region64
        $region63: #{tpu_custom_call.1} parent=59 // pred_region
          %p417 = scmp.lt.s32.totalorder %s27, 1
          %s418 = scalar_select %p417, %s27, 1
          %s419 = smul.addr %s418, 7
          %s420 = smul.addr %s419, 8
          %s421 = scalar_lea.vmem %s0, %s420
        $region64: #{tpu_custom_call.1} parent=59 // pred_fallthru
          _
        // Predicated region
        $region65: #{tpu_custom_call.1} parent=59 // pred_check
          %p422 = pneg %p73
        $region66: #{tpu_custom_call.1} parent=59 // pred_check_branch
          %424 = sbr.rel (%p422) target = $region68
        $region67: #{tpu_custom_call.1} parent=59 // pred_region
          %p425 = scmp.lt.s32.totalorder %s27, 1
          %s426 = scalar_select %p425, %s27, 1
          %s427 = smul.addr %s426, 8
          %s428 = scalar_lea.vmem %s1, %s427
        $region68: #{tpu_custom_call.1} parent=59 // pred_fallthru
          _
      $region60: #{tpu_custom_call.1} parent=5 // pred_fallthru
        _
      %p429 = scmp.le.s32.totalorder 1, %s27
      %p430 = scmp.lt.s32.totalorder %s27, 3
      %p431 = pnand %p429, %p430
      %p432 = pneg %p431
      // Predicated region
      $region69: #{tpu_custom_call.1} parent=5 // pred_check
        _
      $region70: #{tpu_custom_call.1} parent=5 // pred_check_branch
        %434 = sbr.rel (%p431) target = $region72
      $region71: #{tpu_custom_call.1} parent=5 // pred_region
        %s435 = ssub.s32 %s27, 1
        %p436 = scmp.lt.s32.totalorder %s32, 1
        %s437 = scalar_select %p436, %s32, 1
        %s438 = smul.addr %s437, 7
        %s439 = smul.addr %s438, 8
        %s440 = scalar_lea.vmem %s0, %s439
        %p441 = pneg %p53
        %p442 = pneg %p50
        %p443 = scmp.lt.s32.totalorder %s32, 1
        %s444 = scalar_select %p443, %s32, 1
        %s445 = smul.addr %s444, 8
        %s446 = scalar_lea.vmem %s1, %s445
        %p447 = pneg %p79
        %p448 = pneg %p76
        %p449 = pneg %p100
        %p450 = pneg %p97
        %p451 = pneg %p121
        %p452 = pneg %p118
        %p453 = pneg %p142
        %p454 = pneg %p139
        %p455 = pneg %p163
        %p456 = pneg %p160
        %p457 = pneg %p184
        %p458 = pneg %p181
        %p459 = pneg %p205
        %p460 = pneg %p202
        %p461 = pneg %p226
        %p462 = pneg %p223
        %p463 = pneg %p247
        %p464 = pneg %p244
        %p465 = pneg %p268
        %p466 = pneg %p265
        %p467 = pneg %p289
        %p468 = pneg %p286
        %p469 = pneg %p310
        %p470 = pneg %p307
        %p471 = pneg %p336
        %p472 = pneg %p333
        %s473 = sand.u32 %s323, 1
        %s474 = scalar_lea.sflag [#allocation3], %s473
        %s475 = sand.u32 %s323, 1
        %s476 = smul.addr %s475, 56
        %s477 = scalar_lea.vmem [#allocation2], %s476
        %p478 = pneg %p362
        %p479 = pneg %p359
        %s480 = sand.u32 %s349, 1
        %s481 = scalar_lea.sflag [#allocation5], %s480
        %s482 = sand.u32 %s349, 1
        %s483 = smul.addr %s482, 8
        %s484 = scalar_lea.vmem [#allocation4], %s483
        %p485 = scmp.lt.s32.totalorder %s32, 1
        %s486 = scalar_select %p485, %s32, 1
        %s487 = smul.addr %s486, 7
        %s488 = smul.addr %s487, 8
        %s489 = scalar_lea.vmem %s0, %s488
        %p490 = scmp.lt.s32.totalorder %s32, 1
        %s491 = scalar_select %p490, %s32, 1
        %s492 = smul.addr %s491, 8
        %s493 = scalar_lea.vmem %s1, %s492
        %v495 = vld [vmem:[%s489] sm:$0xff]
        %v496 = vld [vmem:[%s489 + $0x8] sm:$0xff]
        %v497 = vld [vmem:[%s489 + $0x10] sm:$0xff]
        %v498 = vld [vmem:[%s489 + $0x18] sm:$0xff]
        %v499 = vld [vmem:[%s489 + $0x20] sm:$0xff]
        %v500 = vld [vmem:[%s489 + $0x28] sm:$0xff]
        %v501 = vld [vmem:[%s489 + $0x30] sm:$0xff]
        %v502 = vpack.c.bf16 %v495, %v495
        %v503 = vpack.c.bf16 %v496, %v496
        %v504 = vpack.c.bf16 %v497, %v497
        %v505 = vpack.c.bf16 %v498, %v498
        %v506 = vpack.c.bf16 %v499, %v499
        %v507 = vpack.c.bf16 %v500, %v500
        %v508 = vpack.c.bf16 %v501, %v501
        %v509 = vld [vmem:[%s2] sm:$0xf]
        %v510 = vld [vmem:[%s2 + $0x4] sm:$0xf]
        %v511 = vld [vmem:[%s2 + $0x8] sm:$0xf]
        %v512 = vld [vmem:[%s2 + $0xc] sm:$0xf]
        %v513 = vld [vmem:[%s2 + $0x10] sm:$0xf]
        %v514 = vld [vmem:[%s2 + $0x14] sm:$0xf]
        %v515 = vld [vmem:[%s2 + $0x18] sm:$0xf]
        %v516 = vld [vmem:[%s2 + $0x1c] sm:$0xf]
        %v517 = vld [vmem:[%s2 + $0x20] sm:$0xf]
        %v518 = vld [vmem:[%s2 + $0x24] sm:$0xf]
        %v519 = vld [vmem:[%s2 + $0x28] sm:$0xf]
        %v520 = vld [vmem:[%s2 + $0x2c] sm:$0xf]
        %v521 = vld [vmem:[%s2 + $0x30] sm:$0xf]
        %v522 = vld [vmem:[%s2 + $0x34] sm:$0xf]
        %v523 = vld [vmem:[%s2 + $0x38] sm:$0xf]
        %v524 = vld [vmem:[%s2 + $0x3c] sm:$0xf]
        %v525 = vld [vmem:[%s2 + $0x40] sm:$0xf]
        %v526 = vld [vmem:[%s2 + $0x44] sm:$0xf]
        %v527 = vld [vmem:[%s2 + $0x48] sm:$0xf]
        %v528 = vld [vmem:[%s2 + $0x4c] sm:$0xf]
        %v529 = vld [vmem:[%s2 + $0x50] sm:$0xf]
        %v530 = vld [vmem:[%s2 + $0x54] sm:$0xf]
        %v531 = vld [vmem:[%s2 + $0x58] sm:$0xf]
        %v532 = vld [vmem:[%s2 + $0x5c] sm:$0xf]
        %v533 = vld [vmem:[%s2 + $0x60] sm:$0xf]
        %v534 = vld [vmem:[%s2 + $0x64] sm:$0xf]
        %v535 = vld [vmem:[%s2 + $0x68] sm:$0xf]
        %v536 = vld [vmem:[%s2 + $0x6c] sm:$0xf]
        %v537 = vld [vmem:[%s2 + $0x70] sm:$0xf]
        %v538 = vld [vmem:[%s2 + $0x74] sm:$0xf]
        %v539 = vld [vmem:[%s2 + $0x78] sm:$0xf]
        %v540 = vld [vmem:[%s2 + $0x7c] sm:$0xf]
        %v541 = vld [vmem:[%s2 + $0x80] sm:$0xf]
        %v542 = vld [vmem:[%s2 + $0x84] sm:$0xf]
        %v543 = vld [vmem:[%s2 + $0x88] sm:$0xf]
        %v544 = vld [vmem:[%s2 + $0x8c] sm:$0xf]
        %v545 = vld [vmem:[%s2 + $0x90] sm:$0xf]
        %v546 = vld [vmem:[%s2 + $0x94] sm:$0xf]
        %v547 = vld [vmem:[%s2 + $0x98] sm:$0xf]
        %v548 = vld [vmem:[%s2 + $0x9c] sm:$0xf]
        %v549 = vld [vmem:[%s2 + $0xa0] sm:$0xf]
        %v550 = vld [vmem:[%s2 + $0xa4] sm:$0xf]
        %v551 = vld [vmem:[%s2 + $0xa8] sm:$0xf]
        %v552 = vld [vmem:[%s2 + $0xac] sm:$0xf]
        %v553 = vld [vmem:[%s2 + $0xb0] sm:$0xf]
        %v554 = vld [vmem:[%s2 + $0xb4] sm:$0xf]
        %v555 = vld [vmem:[%s2 + $0xb8] sm:$0xf]
        %v556 = vld [vmem:[%s2 + $0xbc] sm:$0xf]
        %v557 = vld [vmem:[%s2 + $0xc0] sm:$0xf]
        %v558 = vld [vmem:[%s2 + $0xc4] sm:$0xf]
        %v559 = vld [vmem:[%s2 + $0xc8] sm:$0xf]
        %v560 = vld [vmem:[%s2 + $0xcc] sm:$0xf]
        %v561 = vld [vmem:[%s2 + $0xd0] sm:$0xf]
        %v562 = vld [vmem:[%s2 + $0xd4] sm:$0xf]
        %v563 = vld [vmem:[%s2 + $0xd8] sm:$0xf]
        %v564 = vld [vmem:[%s2 + $0xdc] sm:$0xf]
        %v565 = vld [vmem:[%s2 + $0xe0] sm:$0xf]
        %v566 = vld [vmem:[%s2 + $0xe4] sm:$0xf]
        %v567 = vld [vmem:[%s2 + $0xe8] sm:$0xf]
        %v568 = vld [vmem:[%s2 + $0xec] sm:$0xf]
        %v569 = vld [vmem:[%s2 + $0xf0] sm:$0xf]
        %v570 = vld [vmem:[%s2 + $0xf4] sm:$0xf]
        %v571 = vld [vmem:[%s2 + $0xf8] sm:$0xf]
        %v572 = vld [vmem:[%s2 + $0xfc] sm:$0xf]
        %v573 = vld [vmem:[%s2 + $0x100] sm:$0xf]
        %v574 = vld [vmem:[%s2 + $0x104] sm:$0xf]
        %v575 = vld [vmem:[%s2 + $0x108] sm:$0xf]
        %v576 = vld [vmem:[%s2 + $0x10c] sm:$0xf]
        %v577 = vld [vmem:[%s2 + $0x110] sm:$0xf]
        %v578 = vld [vmem:[%s2 + $0x114] sm:$0xf]
        %v579 = vld [vmem:[%s2 + $0x118] sm:$0xf]
        %v580 = vld [vmem:[%s2 + $0x11c] sm:$0xf]
        %v581 = vld [vmem:[%s2 + $0x120] sm:$0xf]
        %v582 = vld [vmem:[%s2 + $0x124] sm:$0xf]
        %v583 = vld [vmem:[%s2 + $0x128] sm:$0xf]
        %v584 = vld [vmem:[%s2 + $0x12c] sm:$0xf]
        %v585 = vld [vmem:[%s2 + $0x130] sm:$0xf]
        %v586 = vld [vmem:[%s2 + $0x134] sm:$0xf]
        %v587 = vld [vmem:[%s2 + $0x138] sm:$0xf]
        %v588 = vld [vmem:[%s2 + $0x13c] sm:$0xf]
        %v589 = vld [vmem:[%s2 + $0x140] sm:$0xf]
        %v590 = vld [vmem:[%s2 + $0x144] sm:$0xf]
        %v591 = vld [vmem:[%s2 + $0x148] sm:$0xf]
        %v592 = vld [vmem:[%s2 + $0x14c] sm:$0xf]
        %v593 = vld [vmem:[%s2 + $0x150] sm:$0xf]
        %v594 = vld [vmem:[%s2 + $0x154] sm:$0xf]
        %v595 = vld [vmem:[%s2 + $0x158] sm:$0xf]
        %v596 = vld [vmem:[%s2 + $0x15c] sm:$0xf]
        %v597 = vld [vmem:[%s2 + $0x160] sm:$0xf]
        %v598 = vld [vmem:[%s2 + $0x164] sm:$0xf]
        %v599 = vld [vmem:[%s2 + $0x168] sm:$0xf]
        %v600 = vld [vmem:[%s2 + $0x16c] sm:$0xf]
        %v601 = vld [vmem:[%s2 + $0x170] sm:$0xf]
        %v602 = vld [vmem:[%s2 + $0x174] sm:$0xf]
        %v603 = vld [vmem:[%s2 + $0x178] sm:$0xf]
        %v604 = vld [vmem:[%s2 + $0x17c] sm:$0xf]
        %v605 = vld [vmem:[%s2 + $0x180] sm:$0xf]
        %v606 = vld [vmem:[%s2 + $0x184] sm:$0xf]
        %v607 = vld [vmem:[%s11] ss:$0 sm:$0xff]
        %v706 = vunpack.c.l.b16 %v509
        %v707 = vunpack.c.l.b16 %v510
        %v708 = vunpack.c.l.b16 %v511
        %v709 = vunpack.c.l.b16 %v512
        %v710 = vunpack.c.l.b16 %v513
        %v711 = vunpack.c.l.b16 %v514
        %v712 = vunpack.c.l.b16 %v515
        %v713 = vunpack.c.l.b16 %v516
        %v714 = vunpack.c.l.b16 %v517
        %v715 = vunpack.c.l.b16 %v518
        %v716 = vunpack.c.l.b16 %v519
        %v717 = vunpack.c.l.b16 %v520
        %v718 = vunpack.c.l.b16 %v521
        %v719 = vunpack.c.l.b16 %v522
        %v720 = vunpack.c.l.b16 %v523
        %v721 = vunpack.c.l.b16 %v524
        %v722 = vunpack.c.l.b16 %v525
        %v723 = vunpack.c.l.b16 %v526
        %v724 = vunpack.c.l.b16 %v527
        %v725 = vunpack.c.l.b16 %v528
        %v726 = vunpack.c.l.b16 %v529
        %v727 = vunpack.c.l.b16 %v530
        %v728 = vunpack.c.l.b16 %v531
        %v729 = vunpack.c.l.b16 %v532
        %v730 = vunpack.c.l.b16 %v533
        %v731 = vunpack.c.l.b16 %v534
        %v732 = vunpack.c.l.b16 %v535
        %v733 = vunpack.c.l.b16 %v536
        %v734 = vunpack.c.l.b16 %v537
        %v735 = vunpack.c.l.b16 %v538
        %v736 = vunpack.c.l.b16 %v539
        %v737 = vunpack.c.l.b16 %v540
        %v738 = vunpack.c.l.b16 %v541
        %v739 = vunpack.c.l.b16 %v542
        %v740 = vunpack.c.l.b16 %v543
        %v741 = vunpack.c.l.b16 %v544
        %v742 = vunpack.c.l.b16 %v545
        %v743 = vunpack.c.l.b16 %v546
        %v744 = vunpack.c.l.b16 %v547
        %v745 = vunpack.c.l.b16 %v548
        %v746 = vunpack.c.l.b16 %v549
        %v747 = vunpack.c.l.b16 %v550
        %v748 = vunpack.c.l.b16 %v551
        %v749 = vunpack.c.l.b16 %v552
        %v750 = vunpack.c.l.b16 %v553
        %v751 = vunpack.c.l.b16 %v554
        %v752 = vunpack.c.l.b16 %v555
        %v753 = vunpack.c.l.b16 %v556
        %v754 = vunpack.c.l.b16 %v557
        %v755 = vunpack.c.l.b16 %v558
        %v756 = vunpack.c.l.b16 %v559
        %v757 = vunpack.c.l.b16 %v560
        %v758 = vunpack.c.l.b16 %v561
        %v759 = vunpack.c.l.b16 %v562
        %v760 = vunpack.c.l.b16 %v563
        %v761 = vunpack.c.l.b16 %v564
        %v762 = vunpack.c.l.b16 %v565
        %v763 = vunpack.c.l.b16 %v566
        %v764 = vunpack.c.l.b16 %v567
        %v765 = vunpack.c.l.b16 %v568
        %v766 = vunpack.c.l.b16 %v569
        %v767 = vunpack.c.l.b16 %v570
        %v768 = vunpack.c.l.b16 %v571
        %v769 = vunpack.c.l.b16 %v572
        %v770 = vunpack.c.l.b16 %v573
        %v771 = vunpack.c.l.b16 %v574
        %v772 = vunpack.c.l.b16 %v575
        %v773 = vunpack.c.l.b16 %v576
        %v774 = vunpack.c.l.b16 %v577
        %v775 = vunpack.c.l.b16 %v578
        %v776 = vunpack.c.l.b16 %v579
        %v777 = vunpack.c.l.b16 %v580
        %v778 = vunpack.c.l.b16 %v581
        %v779 = vunpack.c.l.b16 %v582
        %v780 = vunpack.c.l.b16 %v583
        %v781 = vunpack.c.l.b16 %v584
        %v782 = vunpack.c.l.b16 %v585
        %v783 = vunpack.c.l.b16 %v586
        %v784 = vunpack.c.l.b16 %v587
        %v785 = vunpack.c.l.b16 %v588
        %v786 = vunpack.c.l.b16 %v589
        %v787 = vunpack.c.l.b16 %v590
        %v788 = vunpack.c.l.b16 %v591
        %v789 = vunpack.c.l.b16 %v592
        %v790 = vunpack.c.l.b16 %v593
        %v791 = vunpack.c.l.b16 %v594
        %v792 = vunpack.c.l.b16 %v595
        %v793 = vunpack.c.l.b16 %v596
        %v794 = vunpack.c.l.b16 %v597
        %v795 = vunpack.c.l.b16 %v598
        %v796 = vunpack.c.l.b16 %v599
        %v797 = vunpack.c.l.b16 %v600
        %v798 = vunpack.c.l.b16 %v601
        %v799 = vunpack.c.l.b16 %v602
        %v800 = vunpack.c.l.b16 %v603
        %v801 = vunpack.c.l.b16 %v604
        %v802 = vunpack.c.l.b16 %v605
        %v803 = vunpack.c.l.b16 %v606
        %v804 = vpack.c.b16 %v707, %v706
        %v805 = vpack.c.b16 %v709, %v708
        %v806 = vpack.c.b16 %v711, %v710
        %v807 = vpack.c.b16 %v713, %v712
        %v808 = vpack.c.b16 %v715, %v714
        %v809 = vpack.c.b16 %v717, %v716
        %v810 = vpack.c.b16 %v719, %v718
        %v811 = vpack.c.b16 %v721, %v720
        %v812 = vpack.c.b16 %v723, %v722
        %v813 = vpack.c.b16 %v725, %v724
        %v814 = vpack.c.b16 %v727, %v726
        %v815 = vpack.c.b16 %v729, %v728
        %v816 = vpack.c.b16 %v731, %v730
        %v817 = vpack.c.b16 %v733, %v732
        %v818 = vpack.c.b16 %v735, %v734
        %v819 = vpack.c.b16 %v737, %v736
        %v820 = vpack.c.b16 %v739, %v738
        %v821 = vpack.c.b16 %v741, %v740
        %v822 = vpack.c.b16 %v743, %v742
        %v823 = vpack.c.b16 %v745, %v744
        %v824 = vpack.c.b16 %v747, %v746
        %v825 = vpack.c.b16 %v749, %v748
        %v826 = vpack.c.b16 %v751, %v750
        %v827 = vpack.c.b16 %v753, %v752
        %v828 = vpack.c.b16 %v755, %v754
        %v829 = vpack.c.b16 %v757, %v756
        %v830 = vpack.c.b16 %v759, %v758
        %v831 = vpack.c.b16 %v761, %v760
        %v832 = vpack.c.b16 %v763, %v762
        %v833 = vpack.c.b16 %v765, %v764
        %v834 = vpack.c.b16 %v767, %v766
        %v835 = vpack.c.b16 %v769, %v768
        %v836 = vpack.c.b16 %v771, %v770
        %v837 = vpack.c.b16 %v773, %v772
        %v838 = vpack.c.b16 %v775, %v774
        %v839 = vpack.c.b16 %v777, %v776
        %v840 = vpack.c.b16 %v779, %v778
        %v841 = vpack.c.b16 %v781, %v780
        %v842 = vpack.c.b16 %v783, %v782
        %v843 = vpack.c.b16 %v785, %v784
        %v844 = vpack.c.b16 %v787, %v786
        %v845 = vpack.c.b16 %v789, %v788
        %v846 = vpack.c.b16 %v791, %v790
        %v847 = vpack.c.b16 %v793, %v792
        %v848 = vpack.c.b16 %v795, %v794
        %v849 = vpack.c.b16 %v797, %v796
        %v850 = vpack.c.b16 %v799, %v798
        %v851 = vpack.c.b16 %v801, %v800
        %v852 = vpack.c.b16 %v803, %v802
        %vm902 = vcmask 130048
        %v904 = vsel %vm902, %v508, 0
        %906 = vmatprep.subr.bf16.mxu0 0
        %907 = vmatpush1.bf16.msra.mxu0 %v811
        %908 = vmatprep.subr.bf16.mxu0 0
        %909 = vmatpush1.bf16.msra.mxu0 %v810
        %910 = vmatprep.subr.bf16.mxu0 0
        %911 = vmatpush1.bf16.msra.mxu0 %v809
        %912 = vmatprep.subr.bf16.mxu0 0
        %913 = vmatpush1.bf16.msra.mxu0 %v808
        %914 = vmatprep.subr.bf16.mxu0 0
        %915 = vmatpush1.bf16.msra.mxu0 %v807
        %916 = vmatprep.subr.bf16.mxu0 0
        %917 = vmatpush1.bf16.msra.mxu0 %v806
        %918 = vmatprep.subr.bf16.mxu0 0
        %919 = vmatpush1.bf16.msra.mxu0 %v805
        %920 = vmatprep.subr.bf16.mxu0 0
        %921 = vmatpush1.bf16.msra.mxu0 %v804
        %922 = vmatprep.subr.bf16.mxu0 0
        %923 = vmatpush2.bf16.msra.mxu0 %v819
        %924 = vmatprep.subr.bf16.mxu0 0
        %925 = vmatpush2.bf16.msra.mxu0 %v818
        %926 = vmatprep.subr.bf16.mxu0 0
        %927 = vmatpush2.bf16.msra.mxu0 %v817
        %928 = vmatprep.subr.bf16.mxu0 0
        %929 = vmatpush2.bf16.msra.mxu0 %v816
        %930 = vmatprep.subr.bf16.mxu0 0
        %931 = vmatpush2.bf16.msra.mxu0 %v815
        %932 = vmatprep.subr.bf16.mxu0 0
        %933 = vmatpush2.bf16.msra.mxu0 %v814
        %934 = vmatprep.subr.bf16.mxu0 0
        %935 = vmatpush2.bf16.msra.mxu0 %v813
        %936 = vmatprep.subr.bf16.mxu0 0
        %937 = vmatpush2.bf16.msra.mxu0 %v812
        %938 = vmatprep.mubr.bf16.mxu0 %v503
        %939 = vmatmul.mubr.bf16.gmra.mxu0 %v502
        %v940 = vpop.f32.mrf.mxu0
        %v941 = vadd.f32 %v607, %v940
        %v942 = vpop.f32.mrf.mxu0
        %v943 = vpop.f32.mrf.mxu0
        %v944 = vpop.f32.mrf.mxu0
        %945 = vdwg.mxu0
        %946 = vmatprep.subr.bf16.mxu0 0
        %947 = vmatpush1.bf16.msra.mxu0 %v827
        %948 = vmatprep.subr.bf16.mxu0 0
        %949 = vmatpush1.bf16.msra.mxu0 %v826
        %950 = vmatprep.subr.bf16.mxu0 0
        %951 = vmatpush1.bf16.msra.mxu0 %v825
        %952 = vmatprep.subr.bf16.mxu0 0
        %953 = vmatpush1.bf16.msra.mxu0 %v824
        %954 = vmatprep.subr.bf16.mxu0 0
        %955 = vmatpush1.bf16.msra.mxu0 %v823
        %956 = vmatprep.subr.bf16.mxu0 0
        %957 = vmatpush1.bf16.msra.mxu0 %v822
        %958 = vmatprep.subr.bf16.mxu0 0
        %959 = vmatpush1.bf16.msra.mxu0 %v821
        %960 = vmatprep.subr.bf16.mxu0 0
        %961 = vmatpush1.bf16.msra.mxu0 %v820
        %962 = vmatprep.subr.bf16.mxu0 0
        %963 = vmatpush2.bf16.msra.mxu0 %v835
        %964 = vmatprep.subr.bf16.mxu0 0
        %965 = vmatpush2.bf16.msra.mxu0 %v834
        %966 = vmatprep.subr.bf16.mxu0 0
        %967 = vmatpush2.bf16.msra.mxu0 %v833
        %968 = vmatprep.subr.bf16.mxu0 0
        %969 = vmatpush2.bf16.msra.mxu0 %v832
        %970 = vmatprep.subr.bf16.mxu0 0
        %971 = vmatpush2.bf16.msra.mxu0 %v831
        %972 = vmatprep.subr.bf16.mxu0 0
        %973 = vmatpush2.bf16.msra.mxu0 %v830
        %974 = vmatprep.subr.bf16.mxu0 0
        %975 = vmatpush2.bf16.msra.mxu0 %v829
        %976 = vmatprep.subr.bf16.mxu0 0
        %977 = vmatpush2.bf16.msra.mxu0 %v828
        %978 = vmatprep.mubr.bf16.mxu0 %v505
        %979 = vmatmul.mubr.bf16.gmra.mxu0 %v504
        %v980 = vpop.f32.mrf.mxu0
        %v981 = vadd.f32 %v941, %v980
        %v982 = vpop.f32.mrf.mxu0
        %v983 = vpop.f32.mrf.mxu0
        %v984 = vpop.f32.mrf.mxu0
        %985 = vdwg.mxu0
        %986 = vmatprep.subr.bf16.mxu0 0
        %987 = vmatpush1.bf16.msra.mxu0 %v843
        %988 = vmatprep.subr.bf16.mxu0 0
        %989 = vmatpush1.bf16.msra.mxu0 %v842
        %990 = vmatprep.subr.bf16.mxu0 0
        %991 = vmatpush1.bf16.msra.mxu0 %v841
        %992 = vmatprep.subr.bf16.mxu0 0
        %993 = vmatpush1.bf16.msra.mxu0 %v840
        %994 = vmatprep.subr.bf16.mxu0 0
        %995 = vmatpush1.bf16.msra.mxu0 %v839
        %996 = vmatprep.subr.bf16.mxu0 0
        %997 = vmatpush1.bf16.msra.mxu0 %v838
        %998 = vmatprep.subr.bf16.mxu0 0
        %999 = vmatpush1.bf16.msra.mxu0 %v837
        %1000 = vmatprep.subr.bf16.mxu0 0
        %1001 = vmatpush1.bf16.msra.mxu0 %v836
        %1002 = vmatprep.subr.bf16.mxu0 0
        %1003 = vmatpush2.bf16.msra.mxu0 %v851
        %1004 = vmatprep.subr.bf16.mxu0 0
        %1005 = vmatpush2.bf16.msra.mxu0 %v850
        %1006 = vmatprep.subr.bf16.mxu0 0
        %1007 = vmatpush2.bf16.msra.mxu0 %v849
        %1008 = vmatprep.subr.bf16.mxu0 0
        %1009 = vmatpush2.bf16.msra.mxu0 %v848
        %1010 = vmatprep.subr.bf16.mxu0 0
        %1011 = vmatpush2.bf16.msra.mxu0 %v847
        %1012 = vmatprep.subr.bf16.mxu0 0
        %1013 = vmatpush2.bf16.msra.mxu0 %v846
        %1014 = vmatprep.subr.bf16.mxu0 0
        %1015 = vmatpush2.bf16.msra.mxu0 %v845
        %1016 = vmatprep.subr.bf16.mxu0 0
        %1017 = vmatpush2.bf16.msra.mxu0 %v844
        %1018 = vmatprep.mubr.bf16.mxu0 %v507
        %1019 = vmatmul.mubr.bf16.gmra.mxu0 %v506
        %v1020 = vpop.f32.mrf.mxu0
        %v1021 = vadd.f32 %v981, %v1020
        %v1022 = vpop.f32.mrf.mxu0
        %v1023 = vpop.f32.mrf.mxu0
        %v1024 = vpop.f32.mrf.mxu0
        %1025 = vdwg.mxu0
        %1026 = vmatprep.subr.bf16.mxu0 0
        %1027 = vmatpush1.bf16.msra.mxu0 0
        %1028 = vmatprep.subr.bf16.mxu0 0
        %1029 = vmatpush1.bf16.msra.mxu0 0
        %1030 = vmatprep.subr.bf16.mxu0 0
        %1031 = vmatpush1.bf16.msra.mxu0 0
        %1032 = vmatprep.subr.bf16.mxu0 0
        %1033 = vmatpush1.bf16.msra.mxu0 0
        %1034 = vmatprep.subr.bf16.mxu0 0
        %1035 = vmatpush1.bf16.msra.mxu0 0
        %1036 = vmatprep.subr.bf16.mxu0 0
        %1037 = vmatpush1.bf16.msra.mxu0 0
        %1038 = vmatprep.subr.bf16.mxu0 0
        %1039 = vmatpush1.bf16.msra.mxu0 0
        %1040 = vmatprep.subr.bf16.mxu0 0
        %1041 = vmatpush1.bf16.msra.mxu0 %v852
        %1042 = vmatprep.subr.bf16.mxu0 0
        %1043 = vmatpush2.bf16.msra.mxu0 0
        %1044 = vmatprep.subr.bf16.mxu0 0
        %1045 = vmatpush2.bf16.msra.mxu0 0
        %1046 = vmatprep.subr.bf16.mxu0 0
        %1047 = vmatpush2.bf16.msra.mxu0 0
        %1048 = vmatprep.subr.bf16.mxu0 0
        %1049 = vmatpush2.bf16.msra.mxu0 0
        %1050 = vmatprep.subr.bf16.mxu0 0
        %1051 = vmatpush2.bf16.msra.mxu0 0
        %1052 = vmatprep.subr.bf16.mxu0 0
        %1053 = vmatpush2.bf16.msra.mxu0 0
        %1054 = vmatprep.subr.bf16.mxu0 0
        %1055 = vmatpush2.bf16.msra.mxu0 0
        %1056 = vmatprep.subr.bf16.mxu0 0
        %1057 = vmatpush2.bf16.msra.mxu0 0
        %1058 = vmatprep.mubr.bf16.mxu0 0
        %1059 = vmatmul.mubr.bf16.gmra.mxu0 %v904
        %v1060 = vpop.f32.mrf.mxu0
        %v1061 = vadd.f32 %v1021, %v1060
        %v1062 = vpop.f32.mrf.mxu0
        %v1063 = vpop.f32.mrf.mxu0
        %v1064 = vpop.f32.mrf.mxu0
        %1065 = vdwg.mxu0
        %vm1066 = vcmp.ge.f32.partialorder %v1061, 0.0
        %v1067 = vmul.f32 %v1061, 0.01
        %v1068 = vsel %vm1066, %v1061, %v1067
        %v1069 = vpack.c.bf16 %v1068, %v1068
        %v1070 = vld [vmem:[%s3] sm:$0xf]
        %v1071 = vld [vmem:[%s3 + $0x4] sm:$0xf]
        %v1072 = vld [vmem:[%s3 + $0x8] sm:$0xf]
        %v1073 = vld [vmem:[%s3 + $0xc] sm:$0xf]
        %v1074 = vld [vmem:[%s3 + $0x10] sm:$0xf]
        %v1075 = vld [vmem:[%s3 + $0x14] sm:$0xf]
        %v1076 = vld [vmem:[%s3 + $0x18] sm:$0xf]
        %v1077 = vld [vmem:[%s3 + $0x1c] sm:$0xf]
        %v1078 = vld [vmem:[%s3 + $0x20] sm:$0xf]
        %v1079 = vld [vmem:[%s3 + $0x24] sm:$0xf]
        %v1080 = vld [vmem:[%s3 + $0x28] sm:$0xf]
        %v1081 = vld [vmem:[%s3 + $0x2c] sm:$0xf]
        %v1082 = vld [vmem:[%s3 + $0x30] sm:$0xf]
        %v1083 = vld [vmem:[%s3 + $0x34] sm:$0xf]
        %v1084 = vld [vmem:[%s3 + $0x38] sm:$0xf]
        %v1085 = vld [vmem:[%s3 + $0x3c] sm:$0xf]
        %v1086 = vld [vmem:[%s11 + $0x1] ss:$0 sm:$0xff]
        %v1103 = vunpack.c.l.b16 %v1070
        %v1104 = vunpack.c.l.b16 %v1071
        %v1105 = vunpack.c.l.b16 %v1072
        %v1106 = vunpack.c.l.b16 %v1073
        %v1107 = vunpack.c.l.b16 %v1074
        %v1108 = vunpack.c.l.b16 %v1075
        %v1109 = vunpack.c.l.b16 %v1076
        %v1110 = vunpack.c.l.b16 %v1077
        %v1111 = vunpack.c.l.b16 %v1078
        %v1112 = vunpack.c.l.b16 %v1079
        %v1113 = vunpack.c.l.b16 %v1080
        %v1114 = vunpack.c.l.b16 %v1081
        %v1115 = vunpack.c.l.b16 %v1082
        %v1116 = vunpack.c.l.b16 %v1083
        %v1117 = vunpack.c.l.b16 %v1084
        %v1118 = vunpack.c.l.b16 %v1085
        %v1119 = vpack.c.b16 %v1104, %v1103
        %v1120 = vpack.c.b16 %v1106, %v1105
        %v1121 = vpack.c.b16 %v1108, %v1107
        %v1122 = vpack.c.b16 %v1110, %v1109
        %v1123 = vpack.c.b16 %v1112, %v1111
        %v1124 = vpack.c.b16 %v1114, %v1113
        %v1125 = vpack.c.b16 %v1116, %v1115
        %v1126 = vpack.c.b16 %v1118, %v1117
        %1135 = vmatprep.subr.bf16.mxu0 0
        %1136 = vmatpush1.bf16.msra.mxu0 %v1126
        %1137 = vmatprep.subr.bf16.mxu0 0
        %1138 = vmatpush1.bf16.msra.mxu0 %v1125
        %1139 = vmatprep.subr.bf16.mxu0 0
        %1140 = vmatpush1.bf16.msra.mxu0 %v1124
        %1141 = vmatprep.subr.bf16.mxu0 0
        %1142 = vmatpush1.bf16.msra.mxu0 %v1123
        %1143 = vmatprep.subr.bf16.mxu0 0
        %1144 = vmatpush1.bf16.msra.mxu0 %v1122
        %1145 = vmatprep.subr.bf16.mxu0 0
        %1146 = vmatpush1.bf16.msra.mxu0 %v1121
        %1147 = vmatprep.subr.bf16.mxu0 0
        %1148 = vmatpush1.bf16.msra.mxu0 %v1120
        %1149 = vmatprep.subr.bf16.mxu0 0
        %1150 = vmatpush1.bf16.msra.mxu0 %v1119
        %1151 = vmatprep.subr.bf16.mxu0 0
        %1152 = vmatpush2.bf16.msra.mxu0 0
        %1153 = vmatprep.subr.bf16.mxu0 0
        %1154 = vmatpush2.bf16.msra.mxu0 0
        %1155 = vmatprep.subr.bf16.mxu0 0
        %1156 = vmatpush2.bf16.msra.mxu0 0
        %1157 = vmatprep.subr.bf16.mxu0 0
        %1158 = vmatpush2.bf16.msra.mxu0 0
        %1159 = vmatprep.subr.bf16.mxu0 0
        %1160 = vmatpush2.bf16.msra.mxu0 0
        %1161 = vmatprep.subr.bf16.mxu0 0
        %1162 = vmatpush2.bf16.msra.mxu0 0
        %1163 = vmatprep.subr.bf16.mxu0 0
        %1164 = vmatpush2.bf16.msra.mxu0 0
        %1165 = vmatprep.subr.bf16.mxu0 0
        %1166 = vmatpush2.bf16.msra.mxu0 0
        %1167 = vmatprep.mubr.bf16.mxu0 0
        %1168 = vmatmul.mubr.bf16.gmra.mxu0 %v1069
        %v1169 = vpop.f32.mrf.mxu0
        %v1170 = vadd.f32 %v1086, %v1169
        %v1171 = vpop.f32.mrf.mxu0
        %v1172 = vpop.f32.mrf.mxu0
        %v1173 = vpop.f32.mrf.mxu0
        %1174 = vdwg.mxu0
        %vm1175 = vcmp.ge.f32.partialorder %v1170, 0.0
        %v1176 = vmul.f32 %v1170, 0.01
        %v1177 = vsel %vm1175, %v1170, %v1176
        %v1178 = vpack.c.bf16 %v1177, %v1177
        %v1179 = vld [vmem:[%s4] sm:$0xf]
        %v1180 = vld [vmem:[%s4 + $0x4] sm:$0xf]
        %v1181 = vld [vmem:[%s4 + $0x8] sm:$0xf]
        %v1182 = vld [vmem:[%s4 + $0xc] sm:$0xf]
        %v1183 = vld [vmem:[%s11 + $0x2] ss:$0 sm:$0xff]
        %v1188 = vunpack.c.l.b16 %v1179
        %v1189 = vunpack.c.l.b16 %v1180
        %v1190 = vunpack.c.l.b16 %v1181
        %v1191 = vunpack.c.l.b16 %v1182
        %v1192 = vpack.c.b16 %v1189, %v1188
        %v1193 = vpack.c.b16 %v1191, %v1190
        %vm1196 = vcmask 261120
        %v1198 = vsel %vm1196, %v1178, 0
        %1200 = vmatprep.subr.bf16.mxu0 0
        %1201 = vmatpush1.bf16.msra.mxu0 0
        %1202 = vmatprep.subr.bf16.mxu0 0
        %1203 = vmatpush1.bf16.msra.mxu0 0
        %1204 = vmatprep.subr.bf16.mxu0 0
        %1205 = vmatpush1.bf16.msra.mxu0 0
        %1206 = vmatprep.subr.bf16.mxu0 0
        %1207 = vmatpush1.bf16.msra.mxu0 0
        %1208 = vmatprep.subr.bf16.mxu0 0
        %1209 = vmatpush1.bf16.msra.mxu0 0
        %1210 = vmatprep.subr.bf16.mxu0 0
        %1211 = vmatpush1.bf16.msra.mxu0 0
        %1212 = vmatprep.subr.bf16.mxu0 0
        %1213 = vmatpush1.bf16.msra.mxu0 %v1193
        %1214 = vmatprep.subr.bf16.mxu0 0
        %1215 = vmatpush1.bf16.msra.mxu0 %v1192
        %1216 = vmatprep.subr.bf16.mxu0 0
        %1217 = vmatpush2.bf16.msra.mxu0 0
        %1218 = vmatprep.subr.bf16.mxu0 0
        %1219 = vmatpush2.bf16.msra.mxu0 0
        %1220 = vmatprep.subr.bf16.mxu0 0
        %1221 = vmatpush2.bf16.msra.mxu0 0
        %1222 = vmatprep.subr.bf16.mxu0 0
        %1223 = vmatpush2.bf16.msra.mxu0 0
        %1224 = vmatprep.subr.bf16.mxu0 0
        %1225 = vmatpush2.bf16.msra.mxu0 0
        %1226 = vmatprep.subr.bf16.mxu0 0
        %1227 = vmatpush2.bf16.msra.mxu0 0
        %1228 = vmatprep.subr.bf16.mxu0 0
        %1229 = vmatpush2.bf16.msra.mxu0 0
        %1230 = vmatprep.subr.bf16.mxu0 0
        %1231 = vmatpush2.bf16.msra.mxu0 0
        %1232 = vmatprep.mubr.bf16.mxu0 0
        %1233 = vmatmul.mubr.bf16.gmra.mxu0 %v1198
        %v1234 = vpop.f32.mrf.mxu0
        %v1235 = vadd.f32 %v1183, %v1234
        %v1236 = vpop.f32.mrf.mxu0
        %v1237 = vpop.f32.mrf.mxu0
        %v1238 = vpop.f32.mrf.mxu0
        %1239 = vdwg.mxu0
        %vm1240 = vcmp.ge.f32.partialorder %v1235, 0.0
        %v1241 = vmul.f32 %v1235, 0.01
        %v1242 = vsel %vm1240, %v1235, %v1241
        %v1243 = vpack.c.bf16 %v1242, %v1242
        %v1244 = vld [vmem:[%s5] sm:$0xf]
        %v1245 = vld [vmem:[%s5 + $0x4] sm:$0xf]
        %v1246 = vld [vmem:[%s11 + $0x3] ss:$0 sm:$0xff]
        %v1249 = vunpack.c.l.b16 %v1244
        %v1250 = vunpack.c.l.b16 %v1245
        %v1251 = vpack.c.b16 %v1250, %v1249
        %v1254 = vsel %vm902, %v1243, 0
        %1256 = vmatprep.subr.bf16.mxu0 0
        %1257 = vmatpush1.bf16.msra.mxu0 0
        %1258 = vmatprep.subr.bf16.mxu0 0
        %1259 = vmatpush1.bf16.msra.mxu0 0
        %1260 = vmatprep.subr.bf16.mxu0 0
        %1261 = vmatpush1.bf16.msra.mxu0 0
        %1262 = vmatprep.subr.bf16.mxu0 0
        %1263 = vmatpush1.bf16.msra.mxu0 0
        %1264 = vmatprep.subr.bf16.mxu0 0
        %1265 = vmatpush1.bf16.msra.mxu0 0
        %1266 = vmatprep.subr.bf16.mxu0 0
        %1267 = vmatpush1.bf16.msra.mxu0 0
        %1268 = vmatprep.subr.bf16.mxu0 0
        %1269 = vmatpush1.bf16.msra.mxu0 0
        %1270 = vmatprep.subr.bf16.mxu0 0
        %1271 = vmatpush1.bf16.msra.mxu0 %v1251
        %1272 = vmatprep.subr.bf16.mxu0 0
        %1273 = vmatpush2.bf16.msra.mxu0 0
        %1274 = vmatprep.subr.bf16.mxu0 0
        %1275 = vmatpush2.bf16.msra.mxu0 0
        %1276 = vmatprep.subr.bf16.mxu0 0
        %1277 = vmatpush2.bf16.msra.mxu0 0
        %1278 = vmatprep.subr.bf16.mxu0 0
        %1279 = vmatpush2.bf16.msra.mxu0 0
        %1280 = vmatprep.subr.bf16.mxu0 0
        %1281 = vmatpush2.bf16.msra.mxu0 0
        %1282 = vmatprep.subr.bf16.mxu0 0
        %1283 = vmatpush2.bf16.msra.mxu0 0
        %1284 = vmatprep.subr.bf16.mxu0 0
        %1285 = vmatpush2.bf16.msra.mxu0 0
        %1286 = vmatprep.subr.bf16.mxu0 0
        %1287 = vmatpush2.bf16.msra.mxu0 0
        %1288 = vmatprep.mubr.bf16.mxu0 0
        %1289 = vmatmul.mubr.bf16.gmra.mxu0 %v1254
        %v1290 = vpop.f32.mrf.mxu0
        %v1291 = vadd.f32 %v1246, %v1290
        %v1292 = vpop.f32.mrf.mxu0
        %v1293 = vpop.f32.mrf.mxu0
        %v1294 = vpop.f32.mrf.mxu0
        %1295 = vdwg.mxu0
        %v1296 = vld [vmem:[%s493] sm:$0xff]
        %v1297 = vmul.f32 %v1291, 0.5
        %v1298 = vmul.f32 %v1297, 1.442695
        %v1299 = vpow.pop %v1298
        %1301 = vrot.lane.b32.xlu0 %v1299, 120
        %v1302 = vpop.permute.xlu0 %1301
        %v1304 = vmul.f32 %v1296, %v1302
        %v1305 = vadd.f32 %v1304, %v1291
        %v1306 = vpack.c.bf16 %v1305, %v1305
        %v1307 = vld [vmem:[%s6] sm:$0xf]
        %v1308 = vld [vmem:[%s12] sm:$0x1]
        %v1310 = vlaneseq
        %v1311 = vshrl.u32 %v1310, 7
        %v1312 = vsub.s32 0, %v1311
        %v1313 = vrot.slane %v1308, %v1312
        %vm1315 = vcmask 64512
        %v1317 = vsel %vm1315, %v1306, 0
        %vm1319 = vcmask 1043456
        %v1321 = vsel %vm1319, %v1307, 0
        %1323 = vmatprep.subr.bf16.mxu0 0
        %1324 = vmatpush1.bf16.msra.mxu0 0
        %1325 = vmatprep.subr.bf16.mxu0 0
        %1326 = vmatpush1.bf16.msra.mxu0 0
        %1327 = vmatprep.subr.bf16.mxu0 0
        %1328 = vmatpush1.bf16.msra.mxu0 0
        %1329 = vmatprep.subr.bf16.mxu0 0
        %1330 = vmatpush1.bf16.msra.mxu0 0
        %1331 = vmatprep.subr.bf16.mxu0 0
        %1332 = vmatpush1.bf16.msra.mxu0 0
        %1333 = vmatprep.subr.bf16.mxu0 0
        %1334 = vmatpush1.bf16.msra.mxu0 0
        %1335 = vmatprep.subr.bf16.mxu0 0
        %1336 = vmatpush1.bf16.msra.mxu0 0
        %1337 = vmatprep.subr.bf16.mxu0 0
        %1338 = vmatpush1.bf16.msra.mxu0 %v1321
        %1339 = vmatprep.subr.bf16.mxu0 0
        %1340 = vmatpush2.bf16.msra.mxu0 0
        %1341 = vmatprep.subr.bf16.mxu0 0
        %1342 = vmatpush2.bf16.msra.mxu0 0
        %1343 = vmatprep.subr.bf16.mxu0 0
        %1344 = vmatpush2.bf16.msra.mxu0 0
        %1345 = vmatprep.subr.bf16.mxu0 0
        %1346 = vmatpush2.bf16.msra.mxu0 0
        %1347 = vmatprep.subr.bf16.mxu0 0
        %1348 = vmatpush2.bf16.msra.mxu0 0
        %1349 = vmatprep.subr.bf16.mxu0 0
        %1350 = vmatpush2.bf16.msra.mxu0 0
        %1351 = vmatprep.subr.bf16.mxu0 0
        %1352 = vmatpush2.bf16.msra.mxu0 0
        %1353 = vmatprep.subr.bf16.mxu0 0
        %1354 = vmatpush2.bf16.msra.mxu0 0
        %1355 = vmatprep.mubr.bf16.mxu0 0
        %1356 = vmatmul.mubr.bf16.gmra.mxu0 %v1317
        %v1357 = vpop.f32.mrf.mxu0
        %v1358 = vadd.f32 %v1313, %v1357
        %v1359 = vpop.f32.mrf.mxu0
        %v1360 = vpop.f32.mrf.mxu0
        %v1361 = vpop.f32.mrf.mxu0
        %1362 = vdwg.mxu0
        %vm1363 = vcmp.ge.f32.partialorder %v1358, 0.0
        %v1364 = vmul.f32 %v1358, 0.01
        %v1365 = vsel %vm1363, %v1358, %v1364
        %v1366 = vpack.c.bf16 %v1365, %v1365
        %v1367 = vld [vmem:[%s7] sm:$0xf]
        %v1368 = vld [vmem:[%s7 + $0x4] sm:$0xf]
        %v1369 = vld [vmem:[%s7 + $0x8] sm:$0xf]
        %v1370 = vld [vmem:[%s7 + $0xc] sm:$0xf]
        %v1371 = vld [vmem:[%s11 + $0x4] ss:$0 sm:$0xff]
        %v1376 = vunpack.c.l.b16 %v1367
        %v1377 = vunpack.c.l.b16 %v1368
        %v1378 = vunpack.c.l.b16 %v1369
        %v1379 = vunpack.c.l.b16 %v1370
        %v1380 = vpack.c.b16 %v1377, %v1376
        %v1381 = vpack.c.b16 %v1379, %v1378
        %v1385 = vsel %vm1196, %v1366, 0
        %1387 = vmatprep.subr.bf16.mxu0 0
        %1388 = vmatpush1.bf16.msra.mxu0 0
        %1389 = vmatprep.subr.bf16.mxu0 0
        %1390 = vmatpush1.bf16.msra.mxu0 0
        %1391 = vmatprep.subr.bf16.mxu0 0
        %1392 = vmatpush1.bf16.msra.mxu0 0
        %1393 = vmatprep.subr.bf16.mxu0 0
        %1394 = vmatpush1.bf16.msra.mxu0 0
        %1395 = vmatprep.subr.bf16.mxu0 0
        %1396 = vmatpush1.bf16.msra.mxu0 0
        %1397 = vmatprep.subr.bf16.mxu0 0
        %1398 = vmatpush1.bf16.msra.mxu0 0
        %1399 = vmatprep.subr.bf16.mxu0 0
        %1400 = vmatpush1.bf16.msra.mxu0 %v1381
        %1401 = vmatprep.subr.bf16.mxu0 0
        %1402 = vmatpush1.bf16.msra.mxu0 %v1380
        %1403 = vmatprep.subr.bf16.mxu0 0
        %1404 = vmatpush2.bf16.msra.mxu0 0
        %1405 = vmatprep.subr.bf16.mxu0 0
        %1406 = vmatpush2.bf16.msra.mxu0 0
        %1407 = vmatprep.subr.bf16.mxu0 0
        %1408 = vmatpush2.bf16.msra.mxu0 0
        %1409 = vmatprep.subr.bf16.mxu0 0
        %1410 = vmatpush2.bf16.msra.mxu0 0
        %1411 = vmatprep.subr.bf16.mxu0 0
        %1412 = vmatpush2.bf16.msra.mxu0 0
        %1413 = vmatprep.subr.bf16.mxu0 0
        %1414 = vmatpush2.bf16.msra.mxu0 0
        %1415 = vmatprep.subr.bf16.mxu0 0
        %1416 = vmatpush2.bf16.msra.mxu0 0
        %1417 = vmatprep.subr.bf16.mxu0 0
        %1418 = vmatpush2.bf16.msra.mxu0 0
        %1419 = vmatprep.mubr.bf16.mxu0 0
        %1420 = vmatmul.mubr.bf16.gmra.mxu0 %v1385
        %v1421 = vpop.f32.mrf.mxu0
        %v1422 = vadd.f32 %v1371, %v1421
        %v1423 = vpop.f32.mrf.mxu0
        %v1424 = vpop.f32.mrf.mxu0
        %v1425 = vpop.f32.mrf.mxu0
        %1426 = vdwg.mxu0
        %v1427 = vpack.c.bf16 %v1422, %v1422
        %v1428 = vld [vmem:[%s8] sm:$0xf]
        %v1429 = vld [vmem:[%s8 + $0x4] sm:$0xf]
        %v1430 = vld [vmem:[%s8 + $0x8] sm:$0xf]
        %v1431 = vld [vmem:[%s8 + $0xc] sm:$0xf]
        %v1432 = vld [vmem:[%s8 + $0x10] sm:$0xf]
        %v1433 = vld [vmem:[%s8 + $0x14] sm:$0xf]
        %v1434 = vld [vmem:[%s8 + $0x18] sm:$0xf]
        %v1435 = vld [vmem:[%s8 + $0x1c] sm:$0xf]
        %v1436 = vld [vmem:[%s11 + $0x5] ss:$0 sm:$0xff]
        %v1445 = vunpack.c.l.b16 %v1428
        %v1446 = vunpack.c.l.b16 %v1429
        %v1447 = vunpack.c.l.b16 %v1430
        %v1448 = vunpack.c.l.b16 %v1431
        %v1449 = vunpack.c.l.b16 %v1432
        %v1450 = vunpack.c.l.b16 %v1433
        %v1451 = vunpack.c.l.b16 %v1434
        %v1452 = vunpack.c.l.b16 %v1435
        %v1453 = vpack.c.b16 %v1446, %v1445
        %v1454 = vpack.c.b16 %v1448, %v1447
        %v1455 = vpack.c.b16 %v1450, %v1449
        %v1456 = vpack.c.b16 %v1452, %v1451
        %vm1461 = vcmask 523264
        %v1463 = vsel %vm1461, %v1427, 0
        %1465 = vmatprep.subr.bf16.mxu0 0
        %1466 = vmatpush1.bf16.msra.mxu0 0
        %1467 = vmatprep.subr.bf16.mxu0 0
        %1468 = vmatpush1.bf16.msra.mxu0 0
        %1469 = vmatprep.subr.bf16.mxu0 0
        %1470 = vmatpush1.bf16.msra.mxu0 0
        %1471 = vmatprep.subr.bf16.mxu0 0
        %1472 = vmatpush1.bf16.msra.mxu0 0
        %1473 = vmatprep.subr.bf16.mxu0 0
        %1474 = vmatpush1.bf16.msra.mxu0 %v1456
        %1475 = vmatprep.subr.bf16.mxu0 0
        %1476 = vmatpush1.bf16.msra.mxu0 %v1455
        %1477 = vmatprep.subr.bf16.mxu0 0
        %1478 = vmatpush1.bf16.msra.mxu0 %v1454
        %1479 = vmatprep.subr.bf16.mxu0 0
        %1480 = vmatpush1.bf16.msra.mxu0 %v1453
        %1481 = vmatprep.subr.bf16.mxu0 0
        %1482 = vmatpush2.bf16.msra.mxu0 0
        %1483 = vmatprep.subr.bf16.mxu0 0
        %1484 = vmatpush2.bf16.msra.mxu0 0
        %1485 = vmatprep.subr.bf16.mxu0 0
        %1486 = vmatpush2.bf16.msra.mxu0 0
        %1487 = vmatprep.subr.bf16.mxu0 0
        %1488 = vmatpush2.bf16.msra.mxu0 0
        %1489 = vmatprep.subr.bf16.mxu0 0
        %1490 = vmatpush2.bf16.msra.mxu0 0
        %1491 = vmatprep.subr.bf16.mxu0 0
        %1492 = vmatpush2.bf16.msra.mxu0 0
        %1493 = vmatprep.subr.bf16.mxu0 0
        %1494 = vmatpush2.bf16.msra.mxu0 0
        %1495 = vmatprep.subr.bf16.mxu0 0
        %1496 = vmatpush2.bf16.msra.mxu0 0
        %1497 = vmatprep.mubr.bf16.mxu0 0
        %1498 = vmatmul.mubr.bf16.gmra.mxu0 %v1463
        %v1499 = vpop.f32.mrf.mxu0
        %v1500 = vadd.f32 %v1436, %v1499
        %v1501 = vpop.f32.mrf.mxu0
        %v1502 = vpop.f32.mrf.mxu0
        %v1503 = vpop.f32.mrf.mxu0
        %1504 = vdwg.mxu0
        %vm1505 = vcmp.ge.f32.partialorder %v1500, 0.0
        %v1506 = vmul.f32 %v1500, 0.01
        %v1507 = vsel %vm1505, %v1500, %v1506
        %v1508 = vpack.c.bf16 %v1507, %v1507
        %v1509 = vld [vmem:[%s9] sm:$0xff]
        %v1510 = vld [vmem:[%s9 + $0x8] sm:$0xff]
        %v1511 = vld [vmem:[%s9 + $0x10] sm:$0xff]
        %v1512 = vld [vmem:[%s9 + $0x18] sm:$0xff]
        %v1513 = vld [vmem:[%s9 + $0x20] sm:$0xff]
        %v1514 = vld [vmem:[%s9 + $0x28] sm:$0xff]
        %v1515 = vld [vmem:[%s9 + $0x30] sm:$0xff]
        %v1516 = vld [vmem:[%s9 + $0x38] sm:$0xff]
        %v1517 = vld [vmem:[%s9 + $0x40] sm:$0xff]
        %v1518 = vld [vmem:[%s9 + $0x48] sm:$0xff]
        %v1519 = vld [vmem:[%s9 + $0x50] sm:$0xff]
        %v1520 = vld [vmem:[%s9 + $0x58] sm:$0xff]
        %v1521 = vld [vmem:[%s9 + $0x60] sm:$0xff]
        %v1522 = vld [vmem:[%s9 + $0x68] sm:$0xff]
        %v1523 = vld [vmem:[%s9 + $0x70] sm:$0xff]
        %v1524 = vld [vmem:[%s9 + $0x78] sm:$0xff]
        %s1525 = scalar_lea.vmem %s11, 6
        %v1526 = vld [vmem:[%s1525] ss:$8 sm:$0x3]
        %v1528 = vlaneseq
        %v1529 = vshrl.u32 %v1528, 7
        %v1530 = vsub.s32 0, %v1529
        %v1531 = vrot.slane %v1526, %v1530
        %v1532 = vlaneseq
        %v1533 = vshrl.u32 %v1532, 7
        %v1534 = vsub.s32 1, %v1533
        %v1535 = vrot.slane %v1526, %v1534
        %v1554 = vunpack.c.l.b16 %v1509
        %v1555 = vunpack.c.h.b16 %v1509
        %v1556 = vunpack.c.l.b16 %v1510
        %v1557 = vunpack.c.h.b16 %v1510
        %v1558 = vunpack.c.l.b16 %v1511
        %v1559 = vunpack.c.h.b16 %v1511
        %v1560 = vunpack.c.l.b16 %v1512
        %v1561 = vunpack.c.h.b16 %v1512
        %v1562 = vunpack.c.l.b16 %v1513
        %v1563 = vunpack.c.h.b16 %v1513
        %v1564 = vunpack.c.l.b16 %v1514
        %v1565 = vunpack.c.h.b16 %v1514
        %v1566 = vunpack.c.l.b16 %v1515
        %v1567 = vunpack.c.h.b16 %v1515
        %v1568 = vunpack.c.l.b16 %v1516
        %v1569 = vunpack.c.h.b16 %v1516
        %v1570 = vunpack.c.l.b16 %v1517
        %v1571 = vunpack.c.h.b16 %v1517
        %v1572 = vunpack.c.l.b16 %v1518
        %v1573 = vunpack.c.h.b16 %v1518
        %v1574 = vunpack.c.l.b16 %v1519
        %v1575 = vunpack.c.h.b16 %v1519
        %v1576 = vunpack.c.l.b16 %v1520
        %v1577 = vunpack.c.h.b16 %v1520
        %v1578 = vunpack.c.l.b16 %v1521
        %v1579 = vunpack.c.h.b16 %v1521
        %v1580 = vunpack.c.l.b16 %v1522
        %v1581 = vunpack.c.h.b16 %v1522
        %v1582 = vunpack.c.l.b16 %v1523
        %v1583 = vunpack.c.h.b16 %v1523
        %v1584 = vunpack.c.l.b16 %v1524
        %v1585 = vunpack.c.h.b16 %v1524
        %v1586 = vpack.c.b16 %v1556, %v1554
        %v1587 = vpack.c.b16 %v1557, %v1555
        %v1588 = vpack.c.b16 %v1560, %v1558
        %v1589 = vpack.c.b16 %v1561, %v1559
        %v1590 = vpack.c.b16 %v1564, %v1562
        %v1591 = vpack.c.b16 %v1565, %v1563
        %v1592 = vpack.c.b16 %v1568, %v1566
        %v1593 = vpack.c.b16 %v1569, %v1567
        %v1594 = vpack.c.b16 %v1572, %v1570
        %v1595 = vpack.c.b16 %v1573, %v1571
        %v1596 = vpack.c.b16 %v1576, %v1574
        %v1597 = vpack.c.b16 %v1577, %v1575
        %v1598 = vpack.c.b16 %v1580, %v1578
        %v1599 = vpack.c.b16 %v1581, %v1579
        %v1600 = vpack.c.b16 %v1584, %v1582
        %v1601 = vpack.c.b16 %v1585, %v1583
        %1618 = vmatprep.subr.bf16.mxu0 %v1601
        %1619 = vmatpush1.bf16.msra.mxu0 %v1600
        %1620 = vmatprep.subr.bf16.mxu0 %v1599
        %1621 = vmatpush1.bf16.msra.mxu0 %v1598
        %1622 = vmatprep.subr.bf16.mxu0 %v1597
        %1623 = vmatpush1.bf16.msra.mxu0 %v1596
        %1624 = vmatprep.subr.bf16.mxu0 %v1595
        %1625 = vmatpush1.bf16.msra.mxu0 %v1594
        %1626 = vmatprep.subr.bf16.mxu0 %v1593
        %1627 = vmatpush1.bf16.msra.mxu0 %v1592
        %1628 = vmatprep.subr.bf16.mxu0 %v1591
        %1629 = vmatpush1.bf16.msra.mxu0 %v1590
        %1630 = vmatprep.subr.bf16.mxu0 %v1589
        %1631 = vmatpush1.bf16.msra.mxu0 %v1588
        %1632 = vmatprep.subr.bf16.mxu0 %v1587
        %1633 = vmatpush1.bf16.msra.mxu0 %v1586
        %1634 = vmatprep.subr.bf16.mxu0 0
        %1635 = vmatpush2.bf16.msra.mxu0 0
        %1636 = vmatprep.subr.bf16.mxu0 0
        %1637 = vmatpush2.bf16.msra.mxu0 0
        %1638 = vmatprep.subr.bf16.mxu0 0
        %1639 = vmatpush2.bf16.msra.mxu0 0
        %1640 = vmatprep.subr.bf16.mxu0 0
        %1641 = vmatpush2.bf16.msra.mxu0 0
        %1642 = vmatprep.subr.bf16.mxu0 0
        %1643 = vmatpush2.bf16.msra.mxu0 0
        %1644 = vmatprep.subr.bf16.mxu0 0
        %1645 = vmatpush2.bf16.msra.mxu0 0
        %1646 = vmatprep.subr.bf16.mxu0 0
        %1647 = vmatpush2.bf16.msra.mxu0 0
        %1648 = vmatprep.subr.bf16.mxu0 0
        %1649 = vmatpush2.bf16.msra.mxu0 0
        %1650 = vmatprep.mubr.bf16.mxu0 0
        %1651 = vmatmul.mubr.bf16.gmra.mxu0 %v1508
        %v1652 = vpop.f32.mrf.mxu0
        %v1653 = vadd.f32 %v1531, %v1652
        %v1654 = vpop.f32.mrf.mxu0
        %v1655 = vadd.f32 %v1535, %v1654
        %v1656 = vpop.f32.mrf.mxu0
        %v1657 = vpop.f32.mrf.mxu0
        %1658 = vdwg.mxu0
        %vm1659 = vcmp.ge.f32.partialorder %v1653, 0.0
        %vm1660 = vcmp.ge.f32.partialorder %v1655, 0.0
        %v1661 = vmul.f32 %v1653, 0.01
        %v1662 = vmul.f32 %v1655, 0.01
        %v1663 = vsel %vm1659, %v1653, %v1661
        %v1664 = vsel %vm1660, %v1655, %v1662
        %v1665 = vpack.c.bf16 %v1663, %v1663
        %v1666 = vpack.c.bf16 %v1664, %v1664
        %v1667 = vld [vmem:[%s10] sm:$0xff]
        %v1668 = vld [vmem:[%s10 + $0x8] sm:$0xff]
        %v1669 = vld [vmem:[%s10 + $0x10] sm:$0xff]
        %v1670 = vld [vmem:[%s10 + $0x18] sm:$0xf]
        %v1671 = vld [vmem:[%s10 + $0x1c] sm:$0xff]
        %v1672 = vld [vmem:[%s10 + $0x24] sm:$0xff]
        %v1673 = vld [vmem:[%s10 + $0x2c] sm:$0xff]
        %v1674 = vld [vmem:[%s10 + $0x34] sm:$0xf]
        %v1675 = vld [vmem:[%s10 + $0x38] sm:$0xff]
        %v1676 = vld [vmem:[%s10 + $0x40] sm:$0xff]
        %v1677 = vld [vmem:[%s10 + $0x48] sm:$0xff]
        %v1678 = vld [vmem:[%s10 + $0x50] sm:$0xf]
        %v1679 = vld [vmem:[%s10 + $0x54] sm:$0xff]
        %v1680 = vld [vmem:[%s10 + $0x5c] sm:$0xff]
        %v1681 = vld [vmem:[%s10 + $0x64] sm:$0xff]
        %v1682 = vld [vmem:[%s10 + $0x6c] sm:$0xf]
        %v1683 = vld [vmem:[%s10 + $0x70] sm:$0xff]
        %v1684 = vld [vmem:[%s10 + $0x78] sm:$0xff]
        %v1685 = vld [vmem:[%s10 + $0x80] sm:$0xff]
        %v1686 = vld [vmem:[%s10 + $0x88] sm:$0xf]
        %v1687 = vld [vmem:[%s10 + $0x8c] sm:$0xff]
        %v1688 = vld [vmem:[%s10 + $0x94] sm:$0xff]
        %v1689 = vld [vmem:[%s10 + $0x9c] sm:$0xff]
        %v1690 = vld [vmem:[%s10 + $0xa4] sm:$0xf]
        %v1691 = vld [vmem:[%s10 + $0xa8] sm:$0xff]
        %v1692 = vld [vmem:[%s10 + $0xb0] sm:$0xff]
        %v1693 = vld [vmem:[%s10 + $0xb8] sm:$0xff]
        %v1694 = vld [vmem:[%s10 + $0xc0] sm:$0xf]
        %v1695 = vld [vmem:[%s10 + $0xc4] sm:$0xff]
        %v1696 = vld [vmem:[%s10 + $0xcc] sm:$0xff]
        %v1697 = vld [vmem:[%s10 + $0xd4] sm:$0xff]
        %v1698 = vld [vmem:[%s10 + $0xdc] sm:$0xf]
        %v1699 = vld [vmem:[%s10 + $0xe0] sm:$0xff]
        %v1700 = vld [vmem:[%s10 + $0xe8] sm:$0xff]
        %v1701 = vld [vmem:[%s10 + $0xf0] sm:$0xff]
        %v1702 = vld [vmem:[%s10 + $0xf8] sm:$0xf]
        %v1703 = vld [vmem:[%s10 + $0xfc] sm:$0xff]
        %v1704 = vld [vmem:[%s10 + $0x104] sm:$0xff]
        %v1705 = vld [vmem:[%s10 + $0x10c] sm:$0xff]
        %v1706 = vld [vmem:[%s10 + $0x114] sm:$0xf]
        %v1707 = vld [vmem:[%s10 + $0x118] sm:$0xff]
        %v1708 = vld [vmem:[%s10 + $0x120] sm:$0xff]
        %v1709 = vld [vmem:[%s10 + $0x128] sm:$0xff]
        %v1710 = vld [vmem:[%s10 + $0x130] sm:$0xf]
        %v1711 = vld [vmem:[%s10 + $0x134] sm:$0xff]
        %v1712 = vld [vmem:[%s10 + $0x13c] sm:$0xff]
        %v1713 = vld [vmem:[%s10 + $0x144] sm:$0xff]
        %v1714 = vld [vmem:[%s10 + $0x14c] sm:$0xf]
        %v1715 = vld [vmem:[%s10 + $0x150] sm:$0xff]
        %v1716 = vld [vmem:[%s10 + $0x158] sm:$0xff]
        %v1717 = vld [vmem:[%s10 + $0x160] sm:$0xff]
        %v1718 = vld [vmem:[%s10 + $0x168] sm:$0xf]
        %v1719 = vld [vmem:[%s10 + $0x16c] sm:$0xff]
        %v1720 = vld [vmem:[%s10 + $0x174] sm:$0xff]
        %v1721 = vld [vmem:[%s10 + $0x17c] sm:$0xff]
        %v1722 = vld [vmem:[%s10 + $0x184] sm:$0xf]
        %v1723 = vld [vmem:[%s10 + $0x188] sm:$0xff]
        %v1724 = vld [vmem:[%s10 + $0x190] sm:$0xff]
        %v1725 = vld [vmem:[%s10 + $0x198] sm:$0xff]
        %v1726 = vld [vmem:[%s10 + $0x1a0] sm:$0xf]
        %v1727 = vld [vmem:[%s10 + $0x1a4] sm:$0xff]
        %v1728 = vld [vmem:[%s10 + $0x1ac] sm:$0xff]
        %v1729 = vld [vmem:[%s10 + $0x1b4] sm:$0xff]
        %v1730 = vld [vmem:[%s10 + $0x1bc] sm:$0xf]
        %v1731 = vld [vmem:[%s10 + $0x1c0] sm:$0xff]
        %v1732 = vld [vmem:[%s10 + $0x1c8] sm:$0xff]
        %v1733 = vld [vmem:[%s10 + $0x1d0] sm:$0xff]
        %v1734 = vld [vmem:[%s10 + $0x1d8] sm:$0xf]
        %v1735 = vld [vmem:[%s10 + $0x1dc] sm:$0xff]
        %v1736 = vld [vmem:[%s10 + $0x1e4] sm:$0xff]
        %v1737 = vld [vmem:[%s10 + $0x1ec] sm:$0xff]
        %v1738 = vld [vmem:[%s10 + $0x1f4] sm:$0xf]
        %v1739 = vld [vmem:[%s10 + $0x1f8] sm:$0xff]
        %v1740 = vld [vmem:[%s10 + $0x200] sm:$0xff]
        %v1741 = vld [vmem:[%s10 + $0x208] sm:$0xff]
        %v1742 = vld [vmem:[%s10 + $0x210] sm:$0xf]
        %v1743 = vld [vmem:[%s10 + $0x214] sm:$0xff]
        %v1744 = vld [vmem:[%s10 + $0x21c] sm:$0xff]
        %v1745 = vld [vmem:[%s10 + $0x224] sm:$0xff]
        %v1746 = vld [vmem:[%s10 + $0x22c] sm:$0xf]
        %v1747 = vld [vmem:[%s10 + $0x230] sm:$0xff]
        %v1748 = vld [vmem:[%s10 + $0x238] sm:$0xff]
        %v1749 = vld [vmem:[%s10 + $0x240] sm:$0xff]
        %v1750 = vld [vmem:[%s10 + $0x248] sm:$0xf]
        %v1751 = vld [vmem:[%s10 + $0x24c] sm:$0xff]
        %v1752 = vld [vmem:[%s10 + $0x254] sm:$0xff]
        %v1753 = vld [vmem:[%s10 + $0x25c] sm:$0xff]
        %v1754 = vld [vmem:[%s10 + $0x264] sm:$0xf]
        %v1755 = vld [vmem:[%s10 + $0x268] sm:$0xff]
        %v1756 = vld [vmem:[%s10 + $0x270] sm:$0xff]
        %v1757 = vld [vmem:[%s10 + $0x278] sm:$0xff]
        %v1758 = vld [vmem:[%s10 + $0x280] sm:$0xf]
        %v1759 = vld [vmem:[%s10 + $0x284] sm:$0xff]
        %v1760 = vld [vmem:[%s10 + $0x28c] sm:$0xff]
        %v1761 = vld [vmem:[%s10 + $0x294] sm:$0xff]
        %v1762 = vld [vmem:[%s10 + $0x29c] sm:$0xf]
        %v1763 = vld [vmem:[%s10 + $0x2a0] sm:$0xff]
        %v1764 = vld [vmem:[%s10 + $0x2a8] sm:$0xff]
        %v1765 = vld [vmem:[%s10 + $0x2b0] sm:$0xff]
        %v1766 = vld [vmem:[%s10 + $0x2b8] sm:$0xf]
        %v1767 = vld [vmem:[%s10 + $0x2bc] sm:$0xff]
        %v1768 = vld [vmem:[%s10 + $0x2c4] sm:$0xff]
        %v1769 = vld [vmem:[%s10 + $0x2cc] sm:$0xff]
        %v1770 = vld [vmem:[%s10 + $0x2d4] sm:$0xf]
        %v1771 = vld [vmem:[%s10 + $0x2d8] sm:$0xff]
        %v1772 = vld [vmem:[%s10 + $0x2e0] sm:$0xff]
        %v1773 = vld [vmem:[%s10 + $0x2e8] sm:$0xff]
        %v1774 = vld [vmem:[%s10 + $0x2f0] sm:$0xf]
        %v1775 = vld [vmem:[%s10 + $0x2f4] sm:$0xff]
        %v1776 = vld [vmem:[%s10 + $0x2fc] sm:$0xff]
        %v1777 = vld [vmem:[%s10 + $0x304] sm:$0xff]
        %v1778 = vld [vmem:[%s10 + $0x30c] sm:$0xf]
        %v1779 = vld [vmem:[%s10 + $0x310] sm:$0xff]
        %v1780 = vld [vmem:[%s10 + $0x318] sm:$0xff]
        %v1781 = vld [vmem:[%s10 + $0x320] sm:$0xff]
        %v1782 = vld [vmem:[%s10 + $0x328] sm:$0xf]
        %v1783 = vld [vmem:[%s10 + $0x32c] sm:$0xff]
        %v1784 = vld [vmem:[%s10 + $0x334] sm:$0xff]
        %v1785 = vld [vmem:[%s10 + $0x33c] sm:$0xff]
        %v1786 = vld [vmem:[%s10 + $0x344] sm:$0xf]
        %v1787 = vld [vmem:[%s10 + $0x348] sm:$0xff]
        %v1788 = vld [vmem:[%s10 + $0x350] sm:$0xff]
        %v1789 = vld [vmem:[%s10 + $0x358] sm:$0xff]
        %v1790 = vld [vmem:[%s10 + $0x360] sm:$0xf]
        %v1791 = vld [vmem:[%s10 + $0x364] sm:$0xff]
        %v1792 = vld [vmem:[%s10 + $0x36c] sm:$0xff]
        %v1793 = vld [vmem:[%s10 + $0x374] sm:$0xff]
        %v1794 = vld [vmem:[%s10 + $0x37c] sm:$0xf]
        %s1795 = scalar_lea.vmem %s11, 7
        %v1796 = vld [vmem:[%s1795] ss:$8 sm:$0xf]
        %v1797 = vld [vmem:[%s1795] ss:$8 sm:$0x70]
        %v1798 = vor.u32 %v1796, %v1797
        %v1800 = vlaneseq
        %v1801 = vshrl.u32 %v1800, 7
        %v1802 = vsub.s32 0, %v1801
        %v1803 = vrot.slane %v1798, %v1802
        %v1804 = vlaneseq
        %v1805 = vshrl.u32 %v1804, 7
        %v1806 = vsub.s32 1, %v1805
        %v1807 = vrot.slane %v1798, %v1806
        %v1808 = vlaneseq
        %v1809 = vshrl.u32 %v1808, 7
        %v1810 = vsub.s32 2, %v1809
        %v1811 = vrot.slane %v1798, %v1810
        %v1812 = vlaneseq
        %v1813 = vshrl.u32 %v1812, 7
        %v1814 = vsub.s32 3, %v1813
        %v1815 = vrot.slane %v1798, %v1814
        %v1816 = vlaneseq
        %v1817 = vshrl.u32 %v1816, 7
        %v1818 = vsub.s32 4, %v1817
        %v1819 = vrot.slane %v1798, %v1818
        %v1820 = vlaneseq
        %v1821 = vshrl.u32 %v1820, 7
        %v1822 = vsub.s32 5, %v1821
        %v1823 = vrot.slane %v1798, %v1822
        %v1824 = vlaneseq
        %v1825 = vshrl.u32 %v1824, 7
        %v1826 = vsub.s32 6, %v1825
        %v1827 = vrot.slane %v1798, %v1826
        %v1963 = vunpack.c.l.b16 %v1667
        %v1964 = vunpack.c.h.b16 %v1667
        %v1965 = vunpack.c.l.b16 %v1668
        %v1966 = vunpack.c.h.b16 %v1668
        %v1967 = vunpack.c.l.b16 %v1669
        %v1968 = vunpack.c.h.b16 %v1669
        %v1969 = vunpack.c.l.b16 %v1670
        %v1970 = vunpack.c.l.b16 %v1671
        %v1971 = vunpack.c.h.b16 %v1671
        %v1972 = vunpack.c.l.b16 %v1672
        %v1973 = vunpack.c.h.b16 %v1672
        %v1974 = vunpack.c.l.b16 %v1673
        %v1975 = vunpack.c.h.b16 %v1673
        %v1976 = vunpack.c.l.b16 %v1674
        %v1977 = vunpack.c.l.b16 %v1675
        %v1978 = vunpack.c.h.b16 %v1675
        %v1979 = vunpack.c.l.b16 %v1676
        %v1980 = vunpack.c.h.b16 %v1676
        %v1981 = vunpack.c.l.b16 %v1677
        %v1982 = vunpack.c.h.b16 %v1677
        %v1983 = vunpack.c.l.b16 %v1678
        %v1984 = vunpack.c.l.b16 %v1679
        %v1985 = vunpack.c.h.b16 %v1679
        %v1986 = vunpack.c.l.b16 %v1680
        %v1987 = vunpack.c.h.b16 %v1680
        %v1988 = vunpack.c.l.b16 %v1681
        %v1989 = vunpack.c.h.b16 %v1681
        %v1990 = vunpack.c.l.b16 %v1682
        %v1991 = vunpack.c.l.b16 %v1683
        %v1992 = vunpack.c.h.b16 %v1683
        %v1993 = vunpack.c.l.b16 %v1684
        %v1994 = vunpack.c.h.b16 %v1684
        %v1995 = vunpack.c.l.b16 %v1685
        %v1996 = vunpack.c.h.b16 %v1685
        %v1997 = vunpack.c.l.b16 %v1686
        %v1998 = vunpack.c.l.b16 %v1687
        %v1999 = vunpack.c.h.b16 %v1687
        %v2000 = vunpack.c.l.b16 %v1688
        %v2001 = vunpack.c.h.b16 %v1688
        %v2002 = vunpack.c.l.b16 %v1689
        %v2003 = vunpack.c.h.b16 %v1689
        %v2004 = vunpack.c.l.b16 %v1690
        %v2005 = vunpack.c.l.b16 %v1691
        %v2006 = vunpack.c.h.b16 %v1691
        %v2007 = vunpack.c.l.b16 %v1692
        %v2008 = vunpack.c.h.b16 %v1692
        %v2009 = vunpack.c.l.b16 %v1693
        %v2010 = vunpack.c.h.b16 %v1693
        %v2011 = vunpack.c.l.b16 %v1694
        %v2012 = vunpack.c.l.b16 %v1695
        %v2013 = vunpack.c.h.b16 %v1695
        %v2014 = vunpack.c.l.b16 %v1696
        %v2015 = vunpack.c.h.b16 %v1696
        %v2016 = vunpack.c.l.b16 %v1697
        %v2017 = vunpack.c.h.b16 %v1697
        %v2018 = vunpack.c.l.b16 %v1698
        %v2019 = vunpack.c.l.b16 %v1699
        %v2020 = vunpack.c.h.b16 %v1699
        %v2021 = vunpack.c.l.b16 %v1700
        %v2022 = vunpack.c.h.b16 %v1700
        %v2023 = vunpack.c.l.b16 %v1701
        %v2024 = vunpack.c.h.b16 %v1701
        %v2025 = vunpack.c.l.b16 %v1702
        %v2026 = vunpack.c.l.b16 %v1703
        %v2027 = vunpack.c.h.b16 %v1703
        %v2028 = vunpack.c.l.b16 %v1704
        %v2029 = vunpack.c.h.b16 %v1704
        %v2030 = vunpack.c.l.b16 %v1705
        %v2031 = vunpack.c.h.b16 %v1705
        %v2032 = vunpack.c.l.b16 %v1706
        %v2033 = vunpack.c.l.b16 %v1707
        %v2034 = vunpack.c.h.b16 %v1707
        %v2035 = vunpack.c.l.b16 %v1708
        %v2036 = vunpack.c.h.b16 %v1708
        %v2037 = vunpack.c.l.b16 %v1709
        %v2038 = vunpack.c.h.b16 %v1709
        %v2039 = vunpack.c.l.b16 %v1710
        %v2040 = vunpack.c.l.b16 %v1711
        %v2041 = vunpack.c.h.b16 %v1711
        %v2042 = vunpack.c.l.b16 %v1712
        %v2043 = vunpack.c.h.b16 %v1712
        %v2044 = vunpack.c.l.b16 %v1713
        %v2045 = vunpack.c.h.b16 %v1713
        %v2046 = vunpack.c.l.b16 %v1714
        %v2047 = vunpack.c.l.b16 %v1715
        %v2048 = vunpack.c.h.b16 %v1715
        %v2049 = vunpack.c.l.b16 %v1716
        %v2050 = vunpack.c.h.b16 %v1716
        %v2051 = vunpack.c.l.b16 %v1717
        %v2052 = vunpack.c.h.b16 %v1717
        %v2053 = vunpack.c.l.b16 %v1718
        %v2054 = vunpack.c.l.b16 %v1719
        %v2055 = vunpack.c.h.b16 %v1719
        %v2056 = vunpack.c.l.b16 %v1720
        %v2057 = vunpack.c.h.b16 %v1720
        %v2058 = vunpack.c.l.b16 %v1721
        %v2059 = vunpack.c.h.b16 %v1721
        %v2060 = vunpack.c.l.b16 %v1722
        %v2061 = vunpack.c.l.b16 %v1723
        %v2062 = vunpack.c.h.b16 %v1723
        %v2063 = vunpack.c.l.b16 %v1724
        %v2064 = vunpack.c.h.b16 %v1724
        %v2065 = vunpack.c.l.b16 %v1725
        %v2066 = vunpack.c.h.b16 %v1725
        %v2067 = vunpack.c.l.b16 %v1726
        %v2068 = vunpack.c.l.b16 %v1727
        %v2069 = vunpack.c.h.b16 %v1727
        %v2070 = vunpack.c.l.b16 %v1728
        %v2071 = vunpack.c.h.b16 %v1728
        %v2072 = vunpack.c.l.b16 %v1729
        %v2073 = vunpack.c.h.b16 %v1729
        %v2074 = vunpack.c.l.b16 %v1730
        %v2075 = vunpack.c.l.b16 %v1731
        %v2076 = vunpack.c.h.b16 %v1731
        %v2077 = vunpack.c.l.b16 %v1732
        %v2078 = vunpack.c.h.b16 %v1732
        %v2079 = vunpack.c.l.b16 %v1733
        %v2080 = vunpack.c.h.b16 %v1733
        %v2081 = vunpack.c.l.b16 %v1734
        %v2082 = vunpack.c.l.b16 %v1735
        %v2083 = vunpack.c.h.b16 %v1735
        %v2084 = vunpack.c.l.b16 %v1736
        %v2085 = vunpack.c.h.b16 %v1736
        %v2086 = vunpack.c.l.b16 %v1737
        %v2087 = vunpack.c.h.b16 %v1737
        %v2088 = vunpack.c.l.b16 %v1738
        %v2089 = vunpack.c.l.b16 %v1739
        %v2090 = vunpack.c.h.b16 %v1739
        %v2091 = vunpack.c.l.b16 %v1740
        %v2092 = vunpack.c.h.b16 %v1740
        %v2093 = vunpack.c.l.b16 %v1741
        %v2094 = vunpack.c.h.b16 %v1741
        %v2095 = vunpack.c.l.b16 %v1742
        %v2096 = vunpack.c.l.b16 %v1743
        %v2097 = vunpack.c.h.b16 %v1743
        %v2098 = vunpack.c.l.b16 %v1744
        %v2099 = vunpack.c.h.b16 %v1744
        %v2100 = vunpack.c.l.b16 %v1745
        %v2101 = vunpack.c.h.b16 %v1745
        %v2102 = vunpack.c.l.b16 %v1746
        %v2103 = vunpack.c.l.b16 %v1747
        %v2104 = vunpack.c.h.b16 %v1747
        %v2105 = vunpack.c.l.b16 %v1748
        %v2106 = vunpack.c.h.b16 %v1748
        %v2107 = vunpack.c.l.b16 %v1749
        %v2108 = vunpack.c.h.b16 %v1749
        %v2109 = vunpack.c.l.b16 %v1750
        %v2110 = vunpack.c.l.b16 %v1751
        %v2111 = vunpack.c.h.b16 %v1751
        %v2112 = vunpack.c.l.b16 %v1752
        %v2113 = vunpack.c.h.b16 %v1752
        %v2114 = vunpack.c.l.b16 %v1753
        %v2115 = vunpack.c.h.b16 %v1753
        %v2116 = vunpack.c.l.b16 %v1754
        %v2117 = vunpack.c.l.b16 %v1755
        %v2118 = vunpack.c.h.b16 %v1755
        %v2119 = vunpack.c.l.b16 %v1756
        %v2120 = vunpack.c.h.b16 %v1756
        %v2121 = vunpack.c.l.b16 %v1757
        %v2122 = vunpack.c.h.b16 %v1757
        %v2123 = vunpack.c.l.b16 %v1758
        %v2124 = vunpack.c.l.b16 %v1759
        %v2125 = vunpack.c.h.b16 %v1759
        %v2126 = vunpack.c.l.b16 %v1760
        %v2127 = vunpack.c.h.b16 %v1760
        %v2128 = vunpack.c.l.b16 %v1761
        %v2129 = vunpack.c.h.b16 %v1761
        %v2130 = vunpack.c.l.b16 %v1762
        %v2131 = vunpack.c.l.b16 %v1763
        %v2132 = vunpack.c.h.b16 %v1763
        %v2133 = vunpack.c.l.b16 %v1764
        %v2134 = vunpack.c.h.b16 %v1764
        %v2135 = vunpack.c.l.b16 %v1765
        %v2136 = vunpack.c.h.b16 %v1765
        %v2137 = vunpack.c.l.b16 %v1766
        %v2138 = vunpack.c.l.b16 %v1767
        %v2139 = vunpack.c.h.b16 %v1767
        %v2140 = vunpack.c.l.b16 %v1768
        %v2141 = vunpack.c.h.b16 %v1768
        %v2142 = vunpack.c.l.b16 %v1769
        %v2143 = vunpack.c.h.b16 %v1769
        %v2144 = vunpack.c.l.b16 %v1770
        %v2145 = vunpack.c.l.b16 %v1771
        %v2146 = vunpack.c.h.b16 %v1771
        %v2147 = vunpack.c.l.b16 %v1772
        %v2148 = vunpack.c.h.b16 %v1772
        %v2149 = vunpack.c.l.b16 %v1773
        %v2150 = vunpack.c.h.b16 %v1773
        %v2151 = vunpack.c.l.b16 %v1774
        %v2152 = vunpack.c.l.b16 %v1775
        %v2153 = vunpack.c.h.b16 %v1775
        %v2154 = vunpack.c.l.b16 %v1776
        %v2155 = vunpack.c.h.b16 %v1776
        %v2156 = vunpack.c.l.b16 %v1777
        %v2157 = vunpack.c.h.b16 %v1777
        %v2158 = vunpack.c.l.b16 %v1778
        %v2159 = vunpack.c.l.b16 %v1779
        %v2160 = vunpack.c.h.b16 %v1779
        %v2161 = vunpack.c.l.b16 %v1780
        %v2162 = vunpack.c.h.b16 %v1780
        %v2163 = vunpack.c.l.b16 %v1781
        %v2164 = vunpack.c.h.b16 %v1781
        %v2165 = vunpack.c.l.b16 %v1782
        %v2166 = vunpack.c.l.b16 %v1783
        %v2167 = vunpack.c.h.b16 %v1783
        %v2168 = vunpack.c.l.b16 %v1784
        %v2169 = vunpack.c.h.b16 %v1784
        %v2170 = vunpack.c.l.b16 %v1785
        %v2171 = vunpack.c.h.b16 %v1785
        %v2172 = vunpack.c.l.b16 %v1786
        %v2173 = vunpack.c.l.b16 %v1787
        %v2174 = vunpack.c.h.b16 %v1787
        %v2175 = vunpack.c.l.b16 %v1788
        %v2176 = vunpack.c.h.b16 %v1788
        %v2177 = vunpack.c.l.b16 %v1789
        %v2178 = vunpack.c.h.b16 %v1789
        %v2179 = vunpack.c.l.b16 %v1790
        %v2180 = vunpack.c.l.b16 %v1791
        %v2181 = vunpack.c.h.b16 %v1791
        %v2182 = vunpack.c.l.b16 %v1792
        %v2183 = vunpack.c.h.b16 %v1792
        %v2184 = vunpack.c.l.b16 %v1793
        %v2185 = vunpack.c.h.b16 %v1793
        %v2186 = vunpack.c.l.b16 %v1794
        %v2187 = vpack.c.b16 %v1970, %v1963
        %v2188 = vpack.c.b16 %v1971, %v1964
        %v2189 = vpack.c.b16 %v1972, %v1965
        %v2190 = vpack.c.b16 %v1973, %v1966
        %v2191 = vpack.c.b16 %v1974, %v1967
        %v2192 = vpack.c.b16 %v1975, %v1968
        %v2193 = vpack.c.b16 %v1976, %v1969
        %v2194 = vpack.c.b16 %v1984, %v1977
        %v2195 = vpack.c.b16 %v1985, %v1978
        %v2196 = vpack.c.b16 %v1986, %v1979
        %v2197 = vpack.c.b16 %v1987, %v1980
        %v2198 = vpack.c.b16 %v1988, %v1981
        %v2199 = vpack.c.b16 %v1989, %v1982
        %v2200 = vpack.c.b16 %v1990, %v1983
        %v2201 = vpack.c.b16 %v1998, %v1991
        %v2202 = vpack.c.b16 %v1999, %v1992
        %v2203 = vpack.c.b16 %v2000, %v1993
        %v2204 = vpack.c.b16 %v2001, %v1994
        %v2205 = vpack.c.b16 %v2002, %v1995
        %v2206 = vpack.c.b16 %v2003, %v1996
        %v2207 = vpack.c.b16 %v2004, %v1997
        %v2208 = vpack.c.b16 %v2012, %v2005
        %v2209 = vpack.c.b16 %v2013, %v2006
        %v2210 = vpack.c.b16 %v2014, %v2007
        %v2211 = vpack.c.b16 %v2015, %v2008
        %v2212 = vpack.c.b16 %v2016, %v2009
        %v2213 = vpack.c.b16 %v2017, %v2010
        %v2214 = vpack.c.b16 %v2018, %v2011
        %v2215 = vpack.c.b16 %v2026, %v2019
        %v2216 = vpack.c.b16 %v2027, %v2020
        %v2217 = vpack.c.b16 %v2028, %v2021
        %v2218 = vpack.c.b16 %v2029, %v2022
        %v2219 = vpack.c.b16 %v2030, %v2023
        %v2220 = vpack.c.b16 %v2031, %v2024
        %v2221 = vpack.c.b16 %v2032, %v2025
        %v2222 = vpack.c.b16 %v2040, %v2033
        %v2223 = vpack.c.b16 %v2041, %v2034
        %v2224 = vpack.c.b16 %v2042, %v2035
        %v2225 = vpack.c.b16 %v2043, %v2036
        %v2226 = vpack.c.b16 %v2044, %v2037
        %v2227 = vpack.c.b16 %v2045, %v2038
        %v2228 = vpack.c.b16 %v2046, %v2039
        %v2229 = vpack.c.b16 %v2054, %v2047
        %v2230 = vpack.c.b16 %v2055, %v2048
        %v2231 = vpack.c.b16 %v2056, %v2049
        %v2232 = vpack.c.b16 %v2057, %v2050
        %v2233 = vpack.c.b16 %v2058, %v2051
        %v2234 = vpack.c.b16 %v2059, %v2052
        %v2235 = vpack.c.b16 %v2060, %v2053
        %v2236 = vpack.c.b16 %v2068, %v2061
        %v2237 = vpack.c.b16 %v2069, %v2062
        %v2238 = vpack.c.b16 %v2070, %v2063
        %v2239 = vpack.c.b16 %v2071, %v2064
        %v2240 = vpack.c.b16 %v2072, %v2065
        %v2241 = vpack.c.b16 %v2073, %v2066
        %v2242 = vpack.c.b16 %v2074, %v2067
        %v2243 = vpack.c.b16 %v2082, %v2075
        %v2244 = vpack.c.b16 %v2083, %v2076
        %v2245 = vpack.c.b16 %v2084, %v2077
        %v2246 = vpack.c.b16 %v2085, %v2078
        %v2247 = vpack.c.b16 %v2086, %v2079
        %v2248 = vpack.c.b16 %v2087, %v2080
        %v2249 = vpack.c.b16 %v2088, %v2081
        %v2250 = vpack.c.b16 %v2096, %v2089
        %v2251 = vpack.c.b16 %v2097, %v2090
        %v2252 = vpack.c.b16 %v2098, %v2091
        %v2253 = vpack.c.b16 %v2099, %v2092
        %v2254 = vpack.c.b16 %v2100, %v2093
        %v2255 = vpack.c.b16 %v2101, %v2094
        %v2256 = vpack.c.b16 %v2102, %v2095
        %v2257 = vpack.c.b16 %v2110, %v2103
        %v2258 = vpack.c.b16 %v2111, %v2104
        %v2259 = vpack.c.b16 %v2112, %v2105
        %v2260 = vpack.c.b16 %v2113, %v2106
        %v2261 = vpack.c.b16 %v2114, %v2107
        %v2262 = vpack.c.b16 %v2115, %v2108
        %v2263 = vpack.c.b16 %v2116, %v2109
        %v2264 = vpack.c.b16 %v2124, %v2117
        %v2265 = vpack.c.b16 %v2125, %v2118
        %v2266 = vpack.c.b16 %v2126, %v2119
        %v2267 = vpack.c.b16 %v2127, %v2120
        %v2268 = vpack.c.b16 %v2128, %v2121
        %v2269 = vpack.c.b16 %v2129, %v2122
        %v2270 = vpack.c.b16 %v2130, %v2123
        %v2271 = vpack.c.b16 %v2138, %v2131
        %v2272 = vpack.c.b16 %v2139, %v2132
        %v2273 = vpack.c.b16 %v2140, %v2133
        %v2274 = vpack.c.b16 %v2141, %v2134
        %v2275 = vpack.c.b16 %v2142, %v2135
        %v2276 = vpack.c.b16 %v2143, %v2136
        %v2277 = vpack.c.b16 %v2144, %v2137
        %v2278 = vpack.c.b16 %v2152, %v2145
        %v2279 = vpack.c.b16 %v2153, %v2146
        %v2280 = vpack.c.b16 %v2154, %v2147
        %v2281 = vpack.c.b16 %v2155, %v2148
        %v2282 = vpack.c.b16 %v2156, %v2149
        %v2283 = vpack.c.b16 %v2157, %v2150
        %v2284 = vpack.c.b16 %v2158, %v2151
        %v2285 = vpack.c.b16 %v2166, %v2159
        %v2286 = vpack.c.b16 %v2167, %v2160
        %v2287 = vpack.c.b16 %v2168, %v2161
        %v2288 = vpack.c.b16 %v2169, %v2162
        %v2289 = vpack.c.b16 %v2170, %v2163
        %v2290 = vpack.c.b16 %v2171, %v2164
        %v2291 = vpack.c.b16 %v2172, %v2165
        %v2292 = vpack.c.b16 %v2180, %v2173
        %v2293 = vpack.c.b16 %v2181, %v2174
        %v2294 = vpack.c.b16 %v2182, %v2175
        %v2295 = vpack.c.b16 %v2183, %v2176
        %v2296 = vpack.c.b16 %v2184, %v2177
        %v2297 = vpack.c.b16 %v2185, %v2178
        %v2298 = vpack.c.b16 %v2186, %v2179
        %2411 = vmatprep.subr.bf16.mxu0 %v2237
        %2412 = vmatpush1.bf16.msra.mxu0 %v2236
        %2413 = vmatprep.subr.bf16.mxu0 %v2230
        %2414 = vmatpush1.bf16.msra.mxu0 %v2229
        %2415 = vmatprep.subr.bf16.mxu0 %v2223
        %2416 = vmatpush1.bf16.msra.mxu0 %v2222
        %2417 = vmatprep.subr.bf16.mxu0 %v2216
        %2418 = vmatpush1.bf16.msra.mxu0 %v2215
        %2419 = vmatprep.subr.bf16.mxu0 %v2209
        %2420 = vmatpush1.bf16.msra.mxu0 %v2208
        %2421 = vmatprep.subr.bf16.mxu0 %v2202
        %2422 = vmatpush1.bf16.msra.mxu0 %v2201
        %2423 = vmatprep.subr.bf16.mxu0 %v2195
        %2424 = vmatpush1.bf16.msra.mxu0 %v2194
        %2425 = vmatprep.subr.bf16.mxu0 %v2188
        %2426 = vmatpush1.bf16.msra.mxu0 %v2187
        %2427 = vmatprep.subr.bf16.mxu0 %v2293
        %2428 = vmatpush2.bf16.msra.mxu0 %v2292
        %2429 = vmatprep.subr.bf16.mxu0 %v2286
        %2430 = vmatpush2.bf16.msra.mxu0 %v2285
        %2431 = vmatprep.subr.bf16.mxu0 %v2279
        %2432 = vmatpush2.bf16.msra.mxu0 %v2278
        %2433 = vmatprep.subr.bf16.mxu0 %v2272
        %2434 = vmatpush2.bf16.msra.mxu0 %v2271
        %2435 = vmatprep.subr.bf16.mxu0 %v2265
        %2436 = vmatpush2.bf16.msra.mxu0 %v2264
        %2437 = vmatprep.subr.bf16.mxu0 %v2258
        %2438 = vmatpush2.bf16.msra.mxu0 %v2257
        %2439 = vmatprep.subr.bf16.mxu0 %v2251
        %2440 = vmatpush2.bf16.msra.mxu0 %v2250
        %2441 = vmatprep.subr.bf16.mxu0 %v2244
        %2442 = vmatpush2.bf16.msra.mxu0 %v2243
        %2443 = vmatprep.mubr.bf16.mxu0 %v1666
        %2444 = vmatmul.mubr.bf16.gmra.mxu0 %v1665
        %v2445 = vpop.f32.mrf.mxu0
        %v2446 = vadd.f32 %v1803, %v2445
        %v2447 = vpop.f32.mrf.mxu0
        %v2448 = vadd.f32 %v1807, %v2447
        %v2449 = vpop.f32.mrf.mxu0
        %v2450 = vpop.f32.mrf.mxu0
        %2451 = vdwg.mxu0
        %2452 = vmatprep.subr.bf16.mxu0 %v2239
        %2453 = vmatpush1.bf16.msra.mxu0 %v2238
        %2454 = vmatprep.subr.bf16.mxu0 %v2232
        %2455 = vmatpush1.bf16.msra.mxu0 %v2231
        %2456 = vmatprep.subr.bf16.mxu0 %v2225
        %2457 = vmatpush1.bf16.msra.mxu0 %v2224
        %2458 = vmatprep.subr.bf16.mxu0 %v2218
        %2459 = vmatpush1.bf16.msra.mxu0 %v2217
        %2460 = vmatprep.subr.bf16.mxu0 %v2211
        %2461 = vmatpush1.bf16.msra.mxu0 %v2210
        %2462 = vmatprep.subr.bf16.mxu0 %v2204
        %2463 = vmatpush1.bf16.msra.mxu0 %v2203
        %2464 = vmatprep.subr.bf16.mxu0 %v2197
        %2465 = vmatpush1.bf16.msra.mxu0 %v2196
        %2466 = vmatprep.subr.bf16.mxu0 %v2190
        %2467 = vmatpush1.bf16.msra.mxu0 %v2189
        %2468 = vmatprep.subr.bf16.mxu0 %v2295
        %2469 = vmatpush2.bf16.msra.mxu0 %v2294
        %2470 = vmatprep.subr.bf16.mxu0 %v2288
        %2471 = vmatpush2.bf16.msra.mxu0 %v2287
        %2472 = vmatprep.subr.bf16.mxu0 %v2281
        %2473 = vmatpush2.bf16.msra.mxu0 %v2280
        %2474 = vmatprep.subr.bf16.mxu0 %v2274
        %2475 = vmatpush2.bf16.msra.mxu0 %v2273
        %2476 = vmatprep.subr.bf16.mxu0 %v2267
        %2477 = vmatpush2.bf16.msra.mxu0 %v2266
        %2478 = vmatprep.subr.bf16.mxu0 %v2260
        %2479 = vmatpush2.bf16.msra.mxu0 %v2259
        %2480 = vmatprep.subr.bf16.mxu0 %v2253
        %2481 = vmatpush2.bf16.msra.mxu0 %v2252
        %2482 = vmatprep.subr.bf16.mxu0 %v2246
        %2483 = vmatpush2.bf16.msra.mxu0 %v2245
        %2484 = vmatprep.mubr.bf16.mxu0 %v1666
        %2485 = vmatmul.mubr.bf16.gmra.mxu0 %v1665
        %v2486 = vpop.f32.mrf.mxu0
        %v2487 = vadd.f32 %v1811, %v2486
        %v2488 = vpop.f32.mrf.mxu0
        %v2489 = vadd.f32 %v1815, %v2488
        %v2490 = vpop.f32.mrf.mxu0
        %v2491 = vpop.f32.mrf.mxu0
        %2492 = vdwg.mxu0
        %2493 = vmatprep.subr.bf16.mxu0 %v2241
        %2494 = vmatpush1.bf16.msra.mxu0 %v2240
        %2495 = vmatprep.subr.bf16.mxu0 %v2234
        %2496 = vmatpush1.bf16.msra.mxu0 %v2233
        %2497 = vmatprep.subr.bf16.mxu0 %v2227
        %2498 = vmatpush1.bf16.msra.mxu0 %v2226
        %2499 = vmatprep.subr.bf16.mxu0 %v2220
        %2500 = vmatpush1.bf16.msra.mxu0 %v2219
        %2501 = vmatprep.subr.bf16.mxu0 %v2213
        %2502 = vmatpush1.bf16.msra.mxu0 %v2212
        %2503 = vmatprep.subr.bf16.mxu0 %v2206
        %2504 = vmatpush1.bf16.msra.mxu0 %v2205
        %2505 = vmatprep.subr.bf16.mxu0 %v2199
        %2506 = vmatpush1.bf16.msra.mxu0 %v2198
        %2507 = vmatprep.subr.bf16.mxu0 %v2192
        %2508 = vmatpush1.bf16.msra.mxu0 %v2191
        %2509 = vmatprep.subr.bf16.mxu0 %v2297
        %2510 = vmatpush2.bf16.msra.mxu0 %v2296
        %2511 = vmatprep.subr.bf16.mxu0 %v2290
        %2512 = vmatpush2.bf16.msra.mxu0 %v2289
        %2513 = vmatprep.subr.bf16.mxu0 %v2283
        %2514 = vmatpush2.bf16.msra.mxu0 %v2282
        %2515 = vmatprep.subr.bf16.mxu0 %v2276
        %2516 = vmatpush2.bf16.msra.mxu0 %v2275
        %2517 = vmatprep.subr.bf16.mxu0 %v2269
        %2518 = vmatpush2.bf16.msra.mxu0 %v2268
        %2519 = vmatprep.subr.bf16.mxu0 %v2262
        %2520 = vmatpush2.bf16.msra.mxu0 %v2261
        %2521 = vmatprep.subr.bf16.mxu0 %v2255
        %2522 = vmatpush2.bf16.msra.mxu0 %v2254
        %2523 = vmatprep.subr.bf16.mxu0 %v2248
        %2524 = vmatpush2.bf16.msra.mxu0 %v2247
        %2525 = vmatprep.mubr.bf16.mxu0 %v1666
        %2526 = vmatmul.mubr.bf16.gmra.mxu0 %v1665
        %v2527 = vpop.f32.mrf.mxu0
        %v2528 = vadd.f32 %v1819, %v2527
        %v2529 = vpop.f32.mrf.mxu0
        %v2530 = vadd.f32 %v1823, %v2529
        %v2531 = vpop.f32.mrf.mxu0
        %v2532 = vpop.f32.mrf.mxu0
        %2533 = vdwg.mxu0
        %2534 = vmatprep.subr.bf16.mxu0 0
        %2535 = vmatpush1.bf16.msra.mxu0 %v2242
        %2536 = vmatprep.subr.bf16.mxu0 0
        %2537 = vmatpush1.bf16.msra.mxu0 %v2235
        %2538 = vmatprep.subr.bf16.mxu0 0
        %2539 = vmatpush1.bf16.msra.mxu0 %v2228
        %2540 = vmatprep.subr.bf16.mxu0 0
        %2541 = vmatpush1.bf16.msra.mxu0 %v2221
        %2542 = vmatprep.subr.bf16.mxu0 0
        %2543 = vmatpush1.bf16.msra.mxu0 %v2214
        %2544 = vmatprep.subr.bf16.mxu0 0
        %2545 = vmatpush1.bf16.msra.mxu0 %v2207
        %2546 = vmatprep.subr.bf16.mxu0 0
        %2547 = vmatpush1.bf16.msra.mxu0 %v2200
        %2548 = vmatprep.subr.bf16.mxu0 0
        %2549 = vmatpush1.bf16.msra.mxu0 %v2193
        %2550 = vmatprep.subr.bf16.mxu0 0
        %2551 = vmatpush2.bf16.msra.mxu0 %v2298
        %2552 = vmatprep.subr.bf16.mxu0 0
        %2553 = vmatpush2.bf16.msra.mxu0 %v2291
        %2554 = vmatprep.subr.bf16.mxu0 0
        %2555 = vmatpush2.bf16.msra.mxu0 %v2284
        %2556 = vmatprep.subr.bf16.mxu0 0
        %2557 = vmatpush2.bf16.msra.mxu0 %v2277
        %2558 = vmatprep.subr.bf16.mxu0 0
        %2559 = vmatpush2.bf16.msra.mxu0 %v2270
        %2560 = vmatprep.subr.bf16.mxu0 0
        %2561 = vmatpush2.bf16.msra.mxu0 %v2263
        %2562 = vmatprep.subr.bf16.mxu0 0
        %2563 = vmatpush2.bf16.msra.mxu0 %v2256
        %2564 = vmatprep.subr.bf16.mxu0 0
        %2565 = vmatpush2.bf16.msra.mxu0 %v2249
        %2566 = vmatprep.mubr.bf16.mxu0 %v1666
        %2567 = vmatmul.mubr.bf16.gmra.mxu0 %v1665
        %v2568 = vpop.f32.mrf.mxu0
        %v2569 = vadd.f32 %v1827, %v2568
        %v2570 = vpop.f32.mrf.mxu0
        %v2571 = vpop.f32.mrf.mxu0
        %v2572 = vpop.f32.mrf.mxu0
        %2573 = vdwg.mxu0
        %v2574 = vsub.f32 0.0, %v2446
        %v2575 = vsub.f32 0.0, %v2448
        %v2576 = vsub.f32 0.0, %v2487
        %v2577 = vsub.f32 0.0, %v2489
        %v2578 = vsub.f32 0.0, %v2528
        %v2579 = vsub.f32 0.0, %v2530
        %v2580 = vsub.f32 0.0, %v2569
        %v2581 = vmul.f32 %v2574, 1.442695
        %v2582 = vpow.pop %v2581
        %v2583 = vmul.f32 %v2575, 1.442695
        %v2584 = vpow.pop %v2583
        %v2585 = vmul.f32 %v2576, 1.442695
        %v2586 = vpow.pop %v2585
        %v2587 = vmul.f32 %v2577, 1.442695
        %v2588 = vpow.pop %v2587
        %v2589 = vmul.f32 %v2578, 1.442695
        %v2590 = vpow.pop %v2589
        %v2591 = vmul.f32 %v2579, 1.442695
        %v2592 = vpow.pop %v2591
        %v2593 = vmul.f32 %v2580, 1.442695
        %v2594 = vpow.pop %v2593
        %v2595 = vadd.f32 %v2582, 1.0
        %v2596 = vadd.f32 %v2584, 1.0
        %v2597 = vadd.f32 %v2586, 1.0
        %v2598 = vadd.f32 %v2588, 1.0
        %v2599 = vadd.f32 %v2590, 1.0
        %v2600 = vadd.f32 %v2592, 1.0
        %v2601 = vadd.f32 %v2594, 1.0
        %v2602 = vrcp.pop %v2595
        %v2603 = vrcp.pop %v2596
        %v2604 = vrcp.pop %v2597
        %v2605 = vrcp.pop %v2598
        %v2606 = vrcp.pop %v2599
        %v2607 = vrcp.pop %v2600
        %v2608 = vrcp.pop %v2601
        %2609 = vst [vmem:[%s477] sm:$0xff] %v2602
        %2610 = vst [vmem:[%s477 + $0x8] sm:$0xff] %v2603
        %2611 = vst [vmem:[%s477 + $0x10] sm:$0xff] %v2604
        %2612 = vst [vmem:[%s477 + $0x18] sm:$0xff] %v2605
        %2613 = vst [vmem:[%s477 + $0x20] sm:$0xff] %v2606
        %2614 = vst [vmem:[%s477 + $0x28] sm:$0xff] %v2607
        %2615 = vst.msk [vmem:[%s477 + $0x30] sm:$0xff] %vm902, %v2608
        %2617 = vrot.lane.b32.xlu0 %v1305, 16
        %v2618 = vpop.permute.xlu0 %2617
        %v2620 = vsel %vm902, %v1291, %v2618
        %vm2621 = vcmask 195584
        %2622 = vst.msk [vmem:[%s484] sm:$0xff] %vm2621, %v2620
        %s2623 = sand.u32 %s323, 1
        %s2624 = scalar_lea.sflag [#allocation3], %s2623
        %s2625 = sand.u32 %s323, 1
        %s2626 = smul.addr %s2625, 56
        %s2627 = scalar_lea.vmem [#allocation2], %s2626
        %s2628 = sand.u32 %s349, 1
        %s2629 = scalar_lea.sflag [#allocation5], %s2628
        %s2630 = sand.u32 %s349, 1
        %s2631 = smul.addr %s2630, 8
        %s2632 = scalar_lea.vmem [#allocation4], %s2631
        // Predicated region
        $region73: #{tpu_custom_call.1} parent=71 // pred_check
          %p2633 = pneg %p333
        $region74: #{tpu_custom_call.1} parent=71 // pred_check_branch
          %2635 = sbr.rel (%p2633) target = $region76
        $region75: #{tpu_custom_call.1} parent=71 // pred_region
          %s2637 = ssub.s32 896, 896
          %2638 = vsyncadd %s2624, %s2637
          %s2639 = smul.addr %s32, 7
          %s2640 = smul.addr %s2639, 128
          %s2641 = scalar_lea.hbm %s13, %s2640
          %s2643 = sshll.u32 %s2627, 4
          %s2644 = int_to_ptr.vmem [resolvable:$true] %s2643
          %2646 = dma.vmem_to_hbm [thread:$0]  %s2644, 896, %s2641, %s2624
        $region76: #{tpu_custom_call.1} parent=71 // pred_fallthru
          _
        // Predicated region
        $region77: #{tpu_custom_call.1} parent=71 // pred_check
          %p2647 = pneg %p359
        $region78: #{tpu_custom_call.1} parent=71 // pred_check_branch
          %2649 = sbr.rel (%p2647) target = $region80
        $region79: #{tpu_custom_call.1} parent=71 // pred_region
          %s2651 = ssub.s32 128, 128
          %2652 = vsyncadd %s2629, %s2651
          %s2653 = smul.addr %s32, 128
          %s2654 = scalar_lea.hbm %s14, %s2653
          %s2656 = sshll.u32 %s2632, 4
          %s2657 = int_to_ptr.vmem [resolvable:$true] %s2656
          %2659 = dma.vmem_to_hbm [thread:$0]  %s2657, 128, %s2654, %s2629
        $region80: #{tpu_custom_call.1} parent=71 // pred_fallthru
          _
      $region72: #{tpu_custom_call.1} parent=5 // pred_fallthru
        _
      %p2660 = scmp.le.s32.totalorder 2, %s27
      // Predicated region
      $region81: #{tpu_custom_call.1} parent=5 // pred_check
        %p2661 = pneg %p2660
      $region82: #{tpu_custom_call.1} parent=5 // pred_check_branch
        %2663 = sbr.rel (%p2661) target = $region84
      $region83: #{tpu_custom_call.1} parent=5 // pred_region
        %s2664 = ssub.s32 %s27, 2
        // Predicated region
        $region85: #{tpu_custom_call.1} parent=83 // pred_check
          %p2665 = pneg %p339
        $region86: #{tpu_custom_call.1} parent=83 // pred_check_branch
          %2667 = sbr.rel (%p2665) target = $region88
        $region87: #{tpu_custom_call.1} parent=83 // pred_region
          %s2668 = sand.u32 %s324, 1
          %s2669 = scalar_lea.sflag [#allocation3], %s2668
          %s2670 = sand.u32 %s324, 1
          %s2671 = smul.addr %s2670, 56
          %s2672 = scalar_lea.vmem [#allocation2], %s2671
          %2673 = dma.done %s2669, 896
        $region88: #{tpu_custom_call.1} parent=83 // pred_fallthru
          _
        // Predicated region
        $region89: #{tpu_custom_call.1} parent=83 // pred_check
          %p2674 = pneg %p365
        $region90: #{tpu_custom_call.1} parent=83 // pred_check_branch
          %2676 = sbr.rel (%p2674) target = $region92
        $region91: #{tpu_custom_call.1} parent=83 // pred_region
          %s2677 = sand.u32 %s350, 1
          %s2678 = scalar_lea.sflag [#allocation5], %s2677
          %s2679 = sand.u32 %s350, 1
          %s2680 = smul.addr %s2679, 8
          %s2681 = scalar_lea.vmem [#allocation4], %s2680
          %2682 = dma.done %s2678, 128
        $region92: #{tpu_custom_call.1} parent=83 // pred_fallthru
          _
      $region84: #{tpu_custom_call.1} parent=5 // pred_fallthru
        _
    $region6: #{tpu_custom_call.1} parent=1 // loop_footer
      %s31 = sadd.s32 1, %s27
    $region7: #{tpu_custom_call.1} parent=1 // loop_footer_branch
      %26 = sbr.rel target = $region3
    $region8: #{tpu_custom_call.1} parent=1 // loop_exit
      _
    %2683 = vsyncpa [#allocation3], 1
    %s2684 = scalar_lea.sflag [#allocation3], 1
    %2685 = vsyncpa %s2684, 1
    %2686 = vsyncpa [#allocation5], 1
    %s2687 = scalar_lea.sflag [#allocation5], 1
    %2688 = vsyncpa %s2687, 1

</llo_original>
